<compile_context>
chip_gen: v6e
topology: v6e:2x2x1
jax: 0.10.0
libtpu: 0.0.40
codegen_flags: <defaults>
</compile_context>

<pallas_src>
import functools

import jax
import jax.numpy as jnp
from jax import lax
from jax.experimental import pallas as pl
from jax.experimental.pallas import tpu as pltpu


_NEG_BIG = -1e30   # finite "-inf": padded keys never produce NaN


def _round_up(x, m):
    return (x + m - 1) // m * m


# ---------------------------------------------------------------------------
# Phase 1: 1x1x1-conv projections (q, k, v) -- computed ONCE per token.
# ---------------------------------------------------------------------------
def _proj_kernel(x_ref, wqT_ref, bq_ref, wkT_ref, bk_ref, wvT_ref, bv_ref,
                 q_ref, k_ref, v_ref):
    x = x_ref[...]                                                   # (tp, C) bf16
    q = jnp.dot(x, wqT_ref[...], preferred_element_type=jnp.float32) + bq_ref[...]
    k = jnp.dot(x, wkT_ref[...], preferred_element_type=jnp.float32) + bk_ref[...]
    v = jnp.dot(x, wvT_ref[...], preferred_element_type=jnp.float32) + bv_ref[...]
    q_ref[...] = q.astype(q_ref.dtype)
    k_ref[...] = k.astype(k_ref.dtype)
    v_ref[...] = v.astype(v_ref.dtype)


# ---------------------------------------------------------------------------
# Phase 2: flash-attention over the flattened spatial axis + residual.
# ---------------------------------------------------------------------------
def _flash_kernel(gamma_ref, q_ref, x_ref, k_ref, v_ref, o_ref,
                  m_sc, l_sc, acc_sc, *, n_valid, mask_keys):
    j = pl.program_id(2)
    n_kv = pl.num_programs(2)
    tk = k_ref.shape[0]

    # ---- per-(b, query-tile) init of online-softmax state ----
    @pl.when(j == 0)
    def _():
        m_sc[...] = jnp.full_like(m_sc, _NEG_BIG)
        l_sc[...] = jnp.zeros_like(l_sc)
        acc_sc[...] = jnp.zeros_like(acc_sc)

    # scores: contract the C8 dims directly (q @ k^T, no materialized transpose)
    s = lax.dot_general(q_ref[...], k_ref[...], (((1,), (1,)), ((), ())),
                        preferred_element_type=jnp.float32)         # (tq, tk) f32

    if mask_keys:  # static: only emitted when N was padded up to n_pad
        key_idx = j * tk + lax.broadcasted_iota(jnp.int32, (1, tk), 1)
        s = jnp.where(key_idx < n_valid, s, _NEG_BIG)

    # ---- online softmax update (f32 state, bf16 MXU operands) ----
    m_prev = m_sc[...]
    m_new = jnp.maximum(m_prev, jnp.max(s, axis=-1, keepdims=True))
    alpha = jnp.exp(m_prev - m_new)
    p = jnp.exp(s - m_new)
    l_sc[...] = alpha * l_sc[...] + jnp.sum(p, axis=-1, keepdims=True)
    acc_sc[...] = alpha * acc_sc[...] + jnp.dot(
        p.astype(jnp.bfloat16), v_ref[...], preferred_element_type=jnp.float32)
    m_sc[...] = m_new

    # ---- finalize: normalize once per query row, residual, store ----
    @pl.when(j == n_kv - 1)
    def _():
        inv_l = pl.reciprocal(l_sc[...], approx=True)
        out = acc_sc[...] * inv_l
        o_ref[...] = (gamma_ref[0, 0] * out
                      + x_ref[...].astype(jnp.float32)).astype(o_ref.dtype)


@jax.jit
def self_attention3d(x, wq, bq, wk, bk, wv, bv, gamma):
    """x: (B, C, D, H, W) float32 (NCDHW, like PyTorch). Returns same shape."""
    B, C, D, H, W = x.shape
    N = D * H * W
    C8 = wq.shape[0]

    # --- tile sizes: decouple tq / tk; keep n_pad a multiple of both ---
    n_base = _round_up(N, 8)
    if n_base <= 256:
        tq = tk = n_base
        n_pad = n_base
    else:
        tq, tk = 256, 512
        n_pad = _round_up(N, tk)
    # v7x: make sure >= 2 parallel grid steps so both TensorCores get work.
    if B * (n_pad // tq) < 2 and tq % 16 == 0:
        tq //= 2
    nq_t = n_pad // tq
    nk_t = n_pad // tk
    tp = tq   # projection-kernel tile (divides n_pad)

    # NCDHW -> (B, N, C) channels-last, bf16 (halves the activation HBM stream).
    # TODO(synk): keep activations channels-last (and bf16) across surrounding layers
    # to drop these full-tensor HBM transpose passes XLA emits around the kernels.
    x_nc = jnp.transpose(x.reshape(B, C, N), (0, 2, 1)).astype(jnp.bfloat16)
    if n_pad != N:
        x_nc = jnp.pad(x_nc, ((0, 0), (0, n_pad - N), (0, 0)))

    # Loop-invariant weights: pre-transpose + cast to bf16 once in the wrapper.
    wqT = wq.T.astype(jnp.bfloat16)            # (C, C8)
    wkT = wk.T.astype(jnp.bfloat16)            # (C, C8)
    wvT = wv.T.astype(jnp.bfloat16)            # (C, C)
    bq2 = bq.reshape(1, C8).astype(jnp.float32)
    bk2 = bk.reshape(1, C8).astype(jnp.float32)
    bv2 = bv.reshape(1, C).astype(jnp.float32)
    gamma_smem = jnp.reshape(gamma, (1, 1)).astype(jnp.float32)

    # ---------------- Phase 1: projections (once per token) ----------------
    proj_flops = B * n_pad * (2 * C * C8 * 2 + 2 * C * C)
    proj_bytes = (2 * B * n_pad * C                       # x (bf16)
                  + 2 * (2 * C * C8 + C * C)              # weights (bf16)
                  + 2 * B * n_pad * (2 * C8 + C))         # q, k, v out (bf16)
    q_all, k_all, v_all = pl.pallas_call(
        _proj_kernel,
        out_shape=(jax.ShapeDtypeStruct((B, n_pad, C8), jnp.bfloat16),
                   jax.ShapeDtypeStruct((B, n_pad, C8), jnp.bfloat16),
                   jax.ShapeDtypeStruct((B, n_pad, C), jnp.bfloat16)),
        grid=(B, n_pad // tp),
        in_specs=[
            pl.BlockSpec((None, tp, C), lambda b, i: (b, i, 0)),   # x tile
            pl.BlockSpec((C, C8), lambda b, i: (0, 0)),            # Wq^T
            pl.BlockSpec((1, C8), lambda b, i: (0, 0)),            # bq
            pl.BlockSpec((C, C8), lambda b, i: (0, 0)),            # Wk^T
            pl.BlockSpec((1, C8), lambda b, i: (0, 0)),            # bk
            pl.BlockSpec((C, C), lambda b, i: (0, 0)),             # Wv^T
            pl.BlockSpec((1, C), lambda b, i: (0, 0)),             # bv
        ],
        out_specs=(
            pl.BlockSpec((None, tp, C8), lambda b, i: (b, i, 0)),
            pl.BlockSpec((None, tp, C8), lambda b, i: (b, i, 0)),
            pl.BlockSpec((None, tp, C), lambda b, i: (b, i, 0)),
        ),
        compiler_params=pltpu.CompilerParams(
            dimension_semantics=("parallel", "parallel")),
        cost_estimate=pl.CostEstimate(flops=proj_flops, transcendentals=0,
                                      bytes_accessed=proj_bytes),
    )(x_nc, wqT, bq2, wkT, bk2, wvT, bv2)

    # ------------- Phase 2: flash attention + gamma * out + x --------------
    kernel = functools.partial(_flash_kernel, n_valid=N, mask_keys=(n_pad != N))
    attn_flops = B * (2 * n_pad * n_pad * C8 + 2 * n_pad * n_pad * C)
    attn_trans = B * n_pad * n_pad
    attn_bytes = (2 * B * n_pad * (C8 + C)                # q + residual x (bf16)
                  + 2 * B * nq_t * n_pad * (C8 + C)       # k, v re-streamed per q tile
                  + 4 * B * n_pad * C)                    # output (f32)
    out_nc = pl.pallas_call(
        kernel,
        out_shape=jax.ShapeDtypeStruct((B, n_pad, C), jnp.float32),
        grid=(B, nq_t, nk_t),
        in_specs=[
            pl.BlockSpec(memory_space=pltpu.MemorySpace.SMEM),          # gamma (1,1)
            pl.BlockSpec((None, tq, C8), lambda b, i, j: (b, i, 0)),    # q tile
            pl.BlockSpec((None, tq, C), lambda b, i, j: (b, i, 0)),     # x tile (residual)
            pl.BlockSpec((None, tk, C8), lambda b, i, j: (b, j, 0)),    # k tile
            pl.BlockSpec((None, tk, C), lambda b, i, j: (b, j, 0)),     # v tile
        ],
        out_specs=pl.BlockSpec((None, tq, C), lambda b, i, j: (b, i, 0)),
        scratch_shapes=[
            pltpu.VMEM((tq, 1), jnp.float32),   # running max m
            pltpu.VMEM((tq, 1), jnp.float32),   # running sum l
            pltpu.VMEM((tq, C), jnp.float32),   # output accumulator
        ],
        compiler_params=pltpu.CompilerParams(
            dimension_semantics=("parallel", "parallel", "arbitrary")),
        cost_estimate=pl.CostEstimate(flops=attn_flops,
                                      transcendentals=attn_trans,
                                      bytes_accessed=attn_bytes),
    )(gamma_smem, q_all, x_nc, k_all, v_all)

    out_nc = out_nc[:, :N, :]
    return jnp.transpose(out_nc, (0, 2, 1)).reshape(B, C, D, H, W)


def _reference_forward(x, wq, bq, wk, bk, wv, bv, gamma):
    """Pure-JAX transcription of the PyTorch forward (for correctness check)."""
    B, C, D, H, W = x.shape
    N = D * H * W
    xf = x.reshape(B, C, N)
    q = jnp.einsum('oc,bcn->bon', wq, xf) + bq[None, :, None]   # (B, C8, N)
    k = jnp.einsum('oc,bcn->bon', wk, xf) + bk[None, :, None]   # (B, C8, N)
    v = jnp.einsum('oc,bcn->bon', wv, xf) + bv[None, :, None]   # (B, C,  N)
    qT = jnp.transpose(q, (0, 2, 1))                            # (B, N, C8)
    s = jnp.einsum('bnc,bcm->bnm', qT, k)                       # (B, N, N)
    attn = jax.nn.softmax(s, axis=2)
    out = jnp.einsum('bcn,bmn->bcm', v, attn)                   # value @ attn^T
    out = out.reshape(B, C, D, H, W)
    return gamma * out + x


def _run_case(key, B, C, D, H, W):
    C8 = C // 8
    kx, kwq, kbq, kwk, kbk, kwv, kbv = jax.random.split(key, 7)
    x = jax.random.normal(kx, (B, C, D, H, W), jnp.float32)
    wq = 0.1 * jax.random.normal(kwq, (C8, C), jnp.float32)
    bq = 0.1 * jax.random.normal(kbq, (C8,), jnp.float32)
    wk = 0.1 * jax.random.normal(kwk, (C8, C), jnp.float32)
    bk = 0.1 * jax.random.normal(kbk, (C8,), jnp.float32)
    wv = 0.1 * jax.random.normal(kwv, (C, C), jnp.float32)
    bv = 0.1 * jax.random.normal(kbv, (C,), jnp.float32)
    # PyTorch inits gamma = 0 (output == x); use a nonzero value so the attention
    # path is actually exercised.
    gamma = jnp.full((1,), 0.5, jnp.float32)

    out = self_attention3d(x, wq, bq, wk, bk, wv, bv, gamma)
    out = jax.block_until_ready(out)
    ref = _reference_forward(x, wq, bq, wk, bk, wv, bv, gamma)

    assert out.shape == (B, C, D, H, W)
    err = float(jnp.max(jnp.abs(out - ref)))
    # bf16 activations / MXU operands (f32 accumulation) -> loosened tolerance
    # vs. the pure-f32 reference.
    assert jnp.allclose(out, ref, atol=2e-2, rtol=2e-2), f"max abs err {err}"


if __name__ == "__main__":
    key = jax.random.PRNGKey(0)
    k1, k2 = jax.random.split(key)

    # Case 1: N divisible by the tile (no masking path), B = 2.
    _run_case(k1, B=2, C=16, D=4, H=4, W=4)
    # Case 2: B = 1, N not a multiple of 8 -> exercises the key-padding mask
    # and the "split tq so both v7x cores get work" path.
    _run_case(k2, B=1, C=16, D=3, H=4, W=5)

    print("KERNEL_OK")
</pallas_src>

<mosaic_0001>
module attributes {stable_mosaic.version = 11 : i64} {
  func.func @_flash_kernel(%arg0: i32, %arg1: i32, %arg2: i32, %arg3: memref<1x1xf32, #tpu.memory_space<smem>>, %arg4: memref<1x64x2xbf16, #tpu.memory_space<vmem>>, %arg5: memref<1x64x16xbf16, #tpu.memory_space<vmem>>, %arg6: memref<1x64x2xbf16, #tpu.memory_space<vmem>>, %arg7: memref<1x64x16xbf16, #tpu.memory_space<vmem>>, %arg8: memref<1x64x16xf32, #tpu.memory_space<vmem>>, %arg9: memref<64x1xf32, #tpu.memory_space<vmem>>, %arg10: memref<64x1xf32, #tpu.memory_space<vmem>>, %arg11: memref<64x16xf32, #tpu.memory_space<vmem>>) attributes {dimension_semantics = [#tpu.dimension_semantics<parallel>, #tpu.dimension_semantics<parallel>, #tpu.dimension_semantics<arbitrary>], iteration_bounds = array<i64: 2, 1, 1>, scalar_prefetch = 0 : i64, scratch_operands = 3 : i64, tpu.core_type = #tpu.core_type<tc>, window_params = [{transform_indices = @transform_0, window_bounds = array<i64: 1, 1>}, {transform_indices = @transform_1, window_bounds = array<i64: 1, 64, 2>}, {transform_indices = @transform_2, window_bounds = array<i64: 1, 64, 16>}, {transform_indices = @transform_3, window_bounds = array<i64: 1, 64, 2>}, {transform_indices = @transform_4, window_bounds = array<i64: 1, 64, 16>}, {transform_indices = @transform_5, window_bounds = array<i64: 1, 64, 16>}]} {
    %c0_i32 = arith.constant 0 : i32
    %0 = arith.cmpi eq, %arg2, %c0_i32 : i32
    %1 = arith.extui %0 : i1 to i32
    %c0_i32_0 = arith.constant 0 : i32
    %2 = arith.cmpi ne, %1, %c0_i32_0 : i32
    scf.if %2 {
      %cst_26 = arith.constant -1.000000e+30 : f32
      %36 = vector.broadcast %cst_26 : f32 to vector<64x1xf32>
      %c0_27 = arith.constant 0 : index
      %c0_28 = arith.constant 0 : index
      %37 = vector.load %arg9[%c0_27, %c0_28] : memref<64x1xf32, #tpu.memory_space<vmem>>, vector<64x1xf32>
      tpu.vector_store %arg9[%c0_27, %c0_28], %36 {strides = array<i32>} : memref<64x1xf32, #tpu.memory_space<vmem>>, vector<64x1xf32>,
      %cst_29 = arith.constant 0.000000e+00 : f32
      %38 = vector.broadcast %cst_29 : f32 to vector<64x1xf32>
      %c0_30 = arith.constant 0 : index
      %c0_31 = arith.constant 0 : index
      %39 = vector.load %arg10[%c0_30, %c0_31] : memref<64x1xf32, #tpu.memory_space<vmem>>, vector<64x1xf32>
      tpu.vector_store %arg10[%c0_30, %c0_31], %38 {strides = array<i32>} : memref<64x1xf32, #tpu.memory_space<vmem>>, vector<64x1xf32>,
      %cst_32 = arith.constant 0.000000e+00 : f32
      %40 = vector.broadcast %cst_32 : f32 to vector<64x16xf32>
      %c0_33 = arith.constant 0 : index
      %c0_34 = arith.constant 0 : index
      %41 = vector.load %arg11[%c0_33, %c0_34] : memref<64x16xf32, #tpu.memory_space<vmem>>, vector<64x16xf32>
      tpu.vector_store %arg11[%c0_33, %c0_34], %40 {strides = array<i32>} : memref<64x16xf32, #tpu.memory_space<vmem>>, vector<64x16xf32>,
    } else {
    }
    %c0 = arith.constant 0 : index
    %c0_1 = arith.constant 0 : index
    %c0_2 = arith.constant 0 : index
    %3 = vector.load %arg4[%c0, %c0_1, %c0_2] : memref<1x64x2xbf16, #tpu.memory_space<vmem>>, vector<1x64x2xbf16>
    %4 = vector.shape_cast %3 : vector<1x64x2xbf16> to vector<64x2xbf16>
    %c0_3 = arith.constant 0 : index
    %c0_4 = arith.constant 0 : index
    %c0_5 = arith.constant 0 : index
    %5 = vector.load %arg6[%c0_3, %c0_4, %c0_5] : memref<1x64x2xbf16, #tpu.memory_space<vmem>>, vector<1x64x2xbf16>
    %6 = vector.shape_cast %5 : vector<1x64x2xbf16> to vector<64x2xbf16>
    %cst = arith.constant dense<0.000000e+00> : vector<64x64xf32>
    %7 = tpu.matmul %4, %6, %cst {dimension_numbers = #tpu.dot_dimension_numbers<[1], [1], [0], [0], [0, 0, 1, 0], [], []>} : vector<64x2xbf16>, vector<64x2xbf16>, vector<64x64xf32> -> vector<64x64xf32>
    %c0_6 = arith.constant 0 : index
    %c0_7 = arith.constant 0 : index
    %8 = vector.load %arg9[%c0_6, %c0_7] : memref<64x1xf32, #tpu.memory_space<vmem>>, vector<64x1xf32>
    %cst_8 = arith.constant dense<0xFF800000> : vector<64xf32>
    %9 = vector.multi_reduction <maximumf>, %7, %cst_8 [1] : vector<64x64xf32> to vector<64xf32>
    %10 = vector.shape_cast %9 : vector<64xf32> to vector<64x1xf32>
    %11 = arith.maximumf %8, %10 : vector<64x1xf32>
    %12 = arith.subf %8, %11 : vector<64x1xf32>
    %13 = math.exp %12 : vector<64x1xf32>
    %14 = vector.broadcast %11 : vector<64x1xf32> to vector<64x64xf32>
    %15 = arith.subf %7, %14 : vector<64x64xf32>
    %16 = math.exp %15 : vector<64x64xf32>
    %c0_9 = arith.constant 0 : index
    %c0_10 = arith.constant 0 : index
    %17 = vector.load %arg10[%c0_9, %c0_10] : memref<64x1xf32, #tpu.memory_space<vmem>>, vector<64x1xf32>
    %18 = arith.mulf %13, %17 : vector<64x1xf32>
    %cst_11 = arith.constant dense<0.000000e+00> : vector<64xf32>
    %19 = vector.multi_reduction <add>, %16, %cst_11 [1] : vector<64x64xf32> to vector<64xf32>
    %20 = vector.shape_cast %19 : vector<64xf32> to vector<64x1xf32>
    %21 = arith.addf %18, %20 : vector<64x1xf32>
    %c0_12 = arith.constant 0 : index
    %c0_13 = arith.constant 0 : index
    %22 = vector.load %arg10[%c0_12, %c0_13] : memref<64x1xf32, #tpu.memory_space<vmem>>, vector<64x1xf32>
    tpu.vector_store %arg10[%c0_12, %c0_13], %21 {strides = array<i32>} : memref<64x1xf32, #tpu.memory_space<vmem>>, vector<64x1xf32>,
    %c0_14 = arith.constant 0 : index
    %c0_15 = arith.constant 0 : index
    %23 = vector.load %arg11[%c0_14, %c0_15] : memref<64x16xf32, #tpu.memory_space<vmem>>, vector<64x16xf32>
    %24 = vector.broadcast %13 : vector<64x1xf32> to vector<64x16xf32>
    %25 = arith.mulf %24, %23 : vector<64x16xf32>
    %26 = arith.truncf %16 : vector<64x64xf32> to vector<64x64xbf16>
    %c0_16 = arith.constant 0 : index
    %c0_17 = arith.constant 0 : index
    %c0_18 = arith.constant 0 : index
    %27 = vector.load %arg7[%c0_16, %c0_17, %c0_18] : memref<1x64x16xbf16, #tpu.memory_space<vmem>>, vector<1x64x16xbf16>
    %28 = vector.shape_cast %27 : vector<1x64x16xbf16> to vector<64x16xbf16>
    %cst_19 = arith.constant dense<0.000000e+00> : vector<64x16xf32>
    %29 = tpu.matmul %26, %28, %cst_19 {dimension_numbers = #tpu.dot_dimension_numbers<[1], [0], [0], [1], [0, 0, 1, 1], [], []>} : vector<64x64xbf16>, vector<64x16xbf16>, vector<64x16xf32> -> vector<64x16xf32>
    %30 = arith.addf %25, %29 : vector<64x16xf32>
    %c0_20 = arith.constant 0 : index
    %c0_21 = arith.constant 0 : index
    %31 = vector.load %arg11[%c0_20, %c0_21] : memref<64x16xf32, #tpu.memory_space<vmem>>, vector<64x16xf32>
    tpu.vector_store %arg11[%c0_20, %c0_21], %30 {strides = array<i32>} : memref<64x16xf32, #tpu.memory_space<vmem>>, vector<64x16xf32>,
    %c0_22 = arith.constant 0 : index
    %c0_23 = arith.constant 0 : index
    %32 = vector.load %arg9[%c0_22, %c0_23] : memref<64x1xf32, #tpu.memory_space<vmem>>, vector<64x1xf32>
    tpu.vector_store %arg9[%c0_22, %c0_23], %11 {strides = array<i32>} : memref<64x1xf32, #tpu.memory_space<vmem>>, vector<64x1xf32>,
    %c0_i32_24 = arith.constant 0 : i32
    %33 = arith.cmpi eq, %arg2, %c0_i32_24 : i32
    %34 = arith.extui %33 : i1 to i32
    %c0_i32_25 = arith.constant 0 : i32
    %35 = arith.cmpi ne, %34, %c0_i32_25 : i32
    scf.if %35 {
      %c0_26 = arith.constant 0 : index
      %c0_27 = arith.constant 0 : index
      %36 = vector.load %arg10[%c0_26, %c0_27] : memref<64x1xf32, #tpu.memory_space<vmem>>, vector<64x1xf32>
      %37 = tpu.reciprocal %36 {approx = true} : vector<64x1xf32> -> vector<64x1xf32>
      %c0_28 = arith.constant 0 : index
      %c0_29 = arith.constant 0 : index
      %38 = vector.load %arg11[%c0_28, %c0_29] : memref<64x16xf32, #tpu.memory_space<vmem>>, vector<64x16xf32>
      %39 = vector.broadcast %37 : vector<64x1xf32> to vector<64x16xf32>
      %40 = arith.mulf %38, %39 : vector<64x16xf32>
      %c0_30 = arith.constant 0 : index
      %c0_31 = arith.constant 0 : index
      %41 = memref.load %arg3[%c0_30, %c0_31] : memref<1x1xf32, #tpu.memory_space<smem>>
      %42 = vector.broadcast %41 : f32 to vector<64x16xf32>
      %43 = arith.mulf %42, %40 : vector<64x16xf32>
      %c0_32 = arith.constant 0 : index
      %c0_33 = arith.constant 0 : index
      %c0_34 = arith.constant 0 : index
      %44 = vector.load %arg5[%c0_32, %c0_33, %c0_34] : memref<1x64x16xbf16, #tpu.memory_space<vmem>>, vector<1x64x16xbf16>
      %45 = vector.shape_cast %44 : vector<1x64x16xbf16> to vector<64x16xbf16>
      %46 = arith.extf %45 : vector<64x16xbf16> to vector<64x16xf32>
      %47 = arith.addf %43, %46 : vector<64x16xf32>
      %c0_35 = arith.constant 0 : index
      %c0_36 = arith.constant 0 : index
      %c0_37 = arith.constant 0 : index
      %48 = vector.load %arg8[%c0_35, %c0_36, %c0_37] : memref<1x64x16xf32, #tpu.memory_space<vmem>>, vector<1x64x16xf32>
      %49 = vector.shape_cast %48 : vector<1x64x16xf32> to vector<64x16xf32>
      %50 = vector.shape_cast %47 : vector<64x16xf32> to vector<1x64x16xf32>
      tpu.vector_store %arg8[%c0_35, %c0_36, %c0_37], %50 {strides = array<i32>} : memref<1x64x16xf32, #tpu.memory_space<vmem>>, vector<1x64x16xf32>,
    } else {
    }
    return
  }
  func.func @transform_0(%arg0: i32, %arg1: i32, %arg2: i32) -> (i32, i32) {
    %c0_i32 = arith.constant 0 : i32
    %c0_i32_0 = arith.constant 0 : i32
    %c0_i32_1 = arith.constant 0 : i32
    return %c0_i32, %c0_i32_0 : i32, i32
  }
  func.func @transform_1(%arg0: i32, %arg1: i32, %arg2: i32) -> (i32, i32, i32) {
    %c0_i32 = arith.constant 0 : i32
    %c0_i32_0 = arith.constant 0 : i32
    return %arg0, %arg1, %c0_i32 : i32, i32, i32
  }
  func.func @transform_2(%arg0: i32, %arg1: i32, %arg2: i32) -> (i32, i32, i32) {
    %c0_i32 = arith.constant 0 : i32
    %c0_i32_0 = arith.constant 0 : i32
    return %arg0, %arg1, %c0_i32 : i32, i32, i32
  }
  func.func @transform_3(%arg0: i32, %arg1: i32, %arg2: i32) -> (i32, i32, i32) {
    %c0_i32 = arith.constant 0 : i32
    %c0_i32_0 = arith.constant 0 : i32
    return %arg0, %arg2, %c0_i32 : i32, i32, i32
  }
  func.func @transform_4(%arg0: i32, %arg1: i32, %arg2: i32) -> (i32, i32, i32) {
    %c0_i32 = arith.constant 0 : i32
    %c0_i32_0 = arith.constant 0 : i32
    return %arg0, %arg2, %c0_i32 : i32, i32, i32
  }
  func.func @transform_5(%arg0: i32, %arg1: i32, %arg2: i32) -> (i32, i32, i32) {
    %c0_i32 = arith.constant 0 : i32
    %c0_i32_0 = arith.constant 0 : i32
    return %arg0, %arg1, %c0_i32 : i32, i32, i32
  }
}

module attributes {stable_mosaic.version = 11 : i64} {
  func.func @_proj_kernel(%arg0: i32, %arg1: i32, %arg2: memref<1x64x16xbf16, #tpu.memory_space<vmem>>, %arg3: memref<16x2xbf16, #tpu.memory_space<vmem>>, %arg4: memref<1x2xf32, #tpu.memory_space<vmem>>, %arg5: memref<16x2xbf16, #tpu.memory_space<vmem>>, %arg6: memref<1x2xf32, #tpu.memory_space<vmem>>, %arg7: memref<16x16xbf16, #tpu.memory_space<vmem>>, %arg8: memref<1x16xf32, #tpu.memory_space<vmem>>, %arg9: memref<1x64x2xbf16, #tpu.memory_space<vmem>>, %arg10: memref<1x64x2xbf16, #tpu.memory_space<vmem>>, %arg11: memref<1x64x16xbf16, #tpu.memory_space<vmem>>) attributes {dimension_semantics = [#tpu.dimension_semantics<parallel>, #tpu.dimension_semantics<parallel>], iteration_bounds = array<i64: 2, 1>, scalar_prefetch = 0 : i64, scratch_operands = 0 : i64, tpu.core_type = #tpu.core_type<tc>, window_params = [{transform_indices = @transform_0, window_bounds = array<i64: 1, 64, 16>}, {pipeline_mode = #tpu.pipeline_mode<synchronous>, transform_indices = @transform_1, window_bounds = array<i64: 16, 2>}, {pipeline_mode = #tpu.pipeline_mode<synchronous>, transform_indices = @transform_2, window_bounds = array<i64: 1, 2>}, {pipeline_mode = #tpu.pipeline_mode<synchronous>, transform_indices = @transform_3, window_bounds = array<i64: 16, 2>}, {pipeline_mode = #tpu.pipeline_mode<synchronous>, transform_indices = @transform_4, window_bounds = array<i64: 1, 2>}, {pipeline_mode = #tpu.pipeline_mode<synchronous>, transform_indices = @transform_5, window_bounds = array<i64: 16, 16>}, {pipeline_mode = #tpu.pipeline_mode<synchronous>, transform_indices = @transform_6, window_bounds = array<i64: 1, 16>}, {transform_indices = @transform_7, window_bounds = array<i64: 1, 64, 2>}, {transform_indices = @transform_8, window_bounds = array<i64: 1, 64, 2>}, {transform_indices = @transform_9, window_bounds = array<i64: 1, 64, 16>}]} {
    %c0 = arith.constant 0 : index
    %c0_0 = arith.constant 0 : index
    %c0_1 = arith.constant 0 : index
    %0 = vector.load %arg2[%c0, %c0_0, %c0_1] : memref<1x64x16xbf16, #tpu.memory_space<vmem>>, vector<1x64x16xbf16>
    %1 = vector.shape_cast %0 : vector<1x64x16xbf16> to vector<64x16xbf16>
    %c0_2 = arith.constant 0 : index
    %c0_3 = arith.constant 0 : index
    %2 = vector.load %arg3[%c0_2, %c0_3] : memref<16x2xbf16, #tpu.memory_space<vmem>>, vector<16x2xbf16>
    %cst = arith.constant dense<0.000000e+00> : vector<64x2xf32>
    %3 = tpu.matmul %1, %2, %cst {dimension_numbers = #tpu.dot_dimension_numbers<[1], [0], [0], [1], [0, 0, 1, 1], [], []>} : vector<64x16xbf16>, vector<16x2xbf16>, vector<64x2xf32> -> vector<64x2xf32>
    %c0_4 = arith.constant 0 : index
    %c0_5 = arith.constant 0 : index
    %4 = vector.load %arg4[%c0_4, %c0_5] : memref<1x2xf32, #tpu.memory_space<vmem>>, vector<1x2xf32>
    %5 = vector.broadcast %4 : vector<1x2xf32> to vector<64x2xf32>
    %6 = arith.addf %3, %5 : vector<64x2xf32>
    %c0_6 = arith.constant 0 : index
    %c0_7 = arith.constant 0 : index
    %7 = vector.load %arg5[%c0_6, %c0_7] : memref<16x2xbf16, #tpu.memory_space<vmem>>, vector<16x2xbf16>
    %cst_8 = arith.constant dense<0.000000e+00> : vector<64x2xf32>
    %8 = tpu.matmul %1, %7, %cst_8 {dimension_numbers = #tpu.dot_dimension_numbers<[1], [0], [0], [1], [0, 0, 1, 1], [], []>} : vector<64x16xbf16>, vector<16x2xbf16>, vector<64x2xf32> -> vector<64x2xf32>
    %c0_9 = arith.constant 0 : index
    %c0_10 = arith.constant 0 : index
    %9 = vector.load %arg6[%c0_9, %c0_10] : memref<1x2xf32, #tpu.memory_space<vmem>>, vector<1x2xf32>
    %10 = vector.broadcast %9 : vector<1x2xf32> to vector<64x2xf32>
    %11 = arith.addf %8, %10 : vector<64x2xf32>
    %c0_11 = arith.constant 0 : index
    %c0_12 = arith.constant 0 : index
    %12 = vector.load %arg7[%c0_11, %c0_12] : memref<16x16xbf16, #tpu.memory_space<vmem>>, vector<16x16xbf16>
    %cst_13 = arith.constant dense<0.000000e+00> : vector<64x16xf32>
    %13 = tpu.matmul %1, %12, %cst_13 {dimension_numbers = #tpu.dot_dimension_numbers<[1], [0], [0], [1], [0, 0, 1, 1], [], []>} : vector<64x16xbf16>, vector<16x16xbf16>, vector<64x16xf32> -> vector<64x16xf32>
    %c0_14 = arith.constant 0 : index
    %c0_15 = arith.constant 0 : index
    %14 = vector.load %arg8[%c0_14, %c0_15] : memref<1x16xf32, #tpu.memory_space<vmem>>, vector<1x16xf32>
    %15 = vector.broadcast %14 : vector<1x16xf32> to vector<64x16xf32>
    %16 = arith.addf %13, %15 : vector<64x16xf32>
    %17 = arith.truncf %6 : vector<64x2xf32> to vector<64x2xbf16>
    %c0_16 = arith.constant 0 : index
    %c0_17 = arith.constant 0 : index
    %c0_18 = arith.constant 0 : index
    %18 = vector.load %arg9[%c0_16, %c0_17, %c0_18] : memref<1x64x2xbf16, #tpu.memory_space<vmem>>, vector<1x64x2xbf16>
    %19 = vector.shape_cast %18 : vector<1x64x2xbf16> to vector<64x2xbf16>
    %20 = vector.shape_cast %17 : vector<64x2xbf16> to vector<1x64x2xbf16>
    tpu.vector_store %arg9[%c0_16, %c0_17, %c0_18], %20 {strides = array<i32>} : memref<1x64x2xbf16, #tpu.memory_space<vmem>>, vector<1x64x2xbf16>,
    %21 = arith.truncf %11 : vector<64x2xf32> to vector<64x2xbf16>
    %c0_19 = arith.constant 0 : index
    %c0_20 = arith.constant 0 : index
    %c0_21 = arith.constant 0 : index
    %22 = vector.load %arg10[%c0_19, %c0_20, %c0_21] : memref<1x64x2xbf16, #tpu.memory_space<vmem>>, vector<1x64x2xbf16>
    %23 = vector.shape_cast %22 : vector<1x64x2xbf16> to vector<64x2xbf16>
    %24 = vector.shape_cast %21 : vector<64x2xbf16> to vector<1x64x2xbf16>
    tpu.vector_store %arg10[%c0_19, %c0_20, %c0_21], %24 {strides = array<i32>} : memref<1x64x2xbf16, #tpu.memory_space<vmem>>, vector<1x64x2xbf16>,
    %25 = arith.truncf %16 : vector<64x16xf32> to vector<64x16xbf16>
    %c0_22 = arith.constant 0 : index
    %c0_23 = arith.constant 0 : index
    %c0_24 = arith.constant 0 : index
    %26 = vector.load %arg11[%c0_22, %c0_23, %c0_24] : memref<1x64x16xbf16, #tpu.memory_space<vmem>>, vector<1x64x16xbf16>
    %27 = vector.shape_cast %26 : vector<1x64x16xbf16> to vector<64x16xbf16>
    %28 = vector.shape_cast %25 : vector<64x16xbf16> to vector<1x64x16xbf16>
    tpu.vector_store %arg11[%c0_22, %c0_23, %c0_24], %28 {strides = array<i32>} : memref<1x64x16xbf16, #tpu.memory_space<vmem>>, vector<1x64x16xbf16>,
    return
  }
  func.func @transform_0(%arg0: i32, %arg1: i32) -> (i32, i32, i32) {
    %c0_i32 = arith.constant 0 : i32
    %c0_i32_0 = arith.constant 0 : i32
    return %arg0, %arg1, %c0_i32 : i32, i32, i32
  }
  func.func @transform_1(%arg0: i32, %arg1: i32) -> (i32, i32) {
    %c0_i32 = arith.constant 0 : i32
    %c0_i32_0 = arith.constant 0 : i32
    %c0_i32_1 = arith.constant 0 : i32
    return %c0_i32, %c0_i32_0 : i32, i32
  }
  func.func @transform_2(%arg0: i32, %arg1: i32) -> (i32, i32) {
    %c0_i32 = arith.constant 0 : i32
    %c0_i32_0 = arith.constant 0 : i32
    %c0_i32_1 = arith.constant 0 : i32
    return %c0_i32, %c0_i32_0 : i32, i32
  }
  func.func @transform_3(%arg0: i32, %arg1: i32) -> (i32, i32) {
    %c0_i32 = arith.constant 0 : i32
    %c0_i32_0 = arith.constant 0 : i32
    %c0_i32_1 = arith.constant 0 : i32
    return %c0_i32, %c0_i32_0 : i32, i32
  }
  func.func @transform_4(%arg0: i32, %arg1: i32) -> (i32, i32) {
    %c0_i32 = arith.constant 0 : i32
    %c0_i32_0 = arith.constant 0 : i32
    %c0_i32_1 = arith.constant 0 : i32
    return %c0_i32, %c0_i32_0 : i32, i32
  }
  func.func @transform_5(%arg0: i32, %arg1: i32) -> (i32, i32) {
    %c0_i32 = arith.constant 0 : i32
    %c0_i32_0 = arith.constant 0 : i32
    %c0_i32_1 = arith.constant 0 : i32
    return %c0_i32, %c0_i32_0 : i32, i32
  }
  func.func @transform_6(%arg0: i32, %arg1: i32) -> (i32, i32) {
    %c0_i32 = arith.constant 0 : i32
    %c0_i32_0 = arith.constant 0 : i32
    %c0_i32_1 = arith.constant 0 : i32
    return %c0_i32, %c0_i32_0 : i32, i32
  }
  func.func @transform_7(%arg0: i32, %arg1: i32) -> (i32, i32, i32) {
    %c0_i32 = arith.constant 0 : i32
    %c0_i32_0 = arith.constant 0 : i32
    return %arg0, %arg1, %c0_i32 : i32, i32, i32
  }
  func.func @transform_8(%arg0: i32, %arg1: i32) -> (i32, i32, i32) {
    %c0_i32 = arith.constant 0 : i32
    %c0_i32_0 = arith.constant 0 : i32
    return %arg0, %arg1, %c0_i32 : i32, i32, i32
  }
  func.func @transform_9(%arg0: i32, %arg1: i32) -> (i32, i32, i32) {
    %c0_i32 = arith.constant 0 : i32
    %c0_i32_0 = arith.constant 0 : i32
    return %arg0, %arg1, %c0_i32 : i32, i32, i32
  }
}

</mosaic_0001>

<llo_original>
// kernel: self_attention3d.2
$region0: #{self_attention3d.2}
  #allocation0 [shape = 'u32[]', space=smem, size = 0x4, offset = 0x4, fixed_abs, tag = 'smem constant byte address 0x4 - core index']
  #allocation1 [shape = 'u32[144,128]{1,0:T(1,128)}', space=vmem, size = 0x12000, scoped, tag = 'internal scratch']
  %s0 = inlined_call_operand.vmem [shape: bf16[2,64,16], index: 0, kind: input, shape index: {}]
  %s1 = inlined_call_operand.vmem [shape: bf16[16,2], index: 1, kind: input, shape index: {}]
  %s2 = inlined_call_operand.vmem [shape: f32[1,2], index: 2, kind: input, shape index: {}]
  %s3 = inlined_call_operand.vmem [shape: bf16[16,2], index: 3, kind: input, shape index: {}]
  %s4 = inlined_call_operand.vmem [shape: f32[1,2], index: 4, kind: input, shape index: {}]
  %s5 = inlined_call_operand.vmem [shape: bf16[16,16], index: 5, kind: input, shape index: {}]
  %s6 = inlined_call_operand.vmem [shape: f32[1,16], index: 6, kind: input, shape index: {}]
  %s7 = inlined_call_operand.vmem [shape: bf16[2,64,2], index: 7, kind: output, shape index: {0}]
  %s8 = inlined_call_operand.vmem [shape: bf16[2,64,2], index: 8, kind: output, shape index: {1}]
  %s9 = inlined_call_operand.vmem [shape: bf16[2,64,16], index: 9, kind: output, shape index: {2}]
  %10 = xla_tuple %s7, %s8, %s9
  %s11 = sld [smem:[#allocation0]]
  $region77: #{self_attention3d.2} parent=0
    _
  %s13 = ssub.s32 1, %s11
  %s14 = scalar_select 0, %s13, %s11
  loop: start=0, step=1, limit=4
  $region2: #{self_attention3d.2} parent=0 // loop_pre_header
    _
  $region3: #{self_attention3d.2} parent=0 // loop_header
    %s16 = sphi 0, %s20
    %p17 = scmp.ge.s32.totalorder %s16, 4
    %s23 = sphi 0, %s35
    %s24 = sphi 0, %s31
    %s25 = sphi 0, %s23
    %s26 = sphi 0, %s24
    %s27 = sphi 0, %s25
    %s28 = sphi 0, %s26
    %s40 = sphi 0, %s42
    %s43 = sphi 0, %s40
    %s44 = sphi 0, %s43
    %s60 = sphi 0, %s44
    %s64 = sphi 0, %s64
    %s66 = sphi 0, %s64
    %s67 = sphi 0, %s66
    %s81 = sphi 0, %s67
    %s85 = sphi 0, %s85
    %s87 = sphi 0, %s85
    %s88 = sphi 0, %s87
    %s102 = sphi 0, %s88
    %s106 = sphi 0, %s106
    %s108 = sphi 0, %s106
    %s109 = sphi 0, %s108
    %s123 = sphi 0, %s109
    %s127 = sphi 0, %s127
    %s129 = sphi 0, %s127
    %s130 = sphi 0, %s129
    %s144 = sphi 0, %s130
    %s148 = sphi 0, %s148
    %s150 = sphi 0, %s148
    %s151 = sphi 0, %s150
    %s165 = sphi 0, %s151
    %s169 = sphi 0, %s169
    %s171 = sphi 0, %s169
    %s172 = sphi 0, %s171
    %s186 = sphi 0, %s172
    %s194 = sphi 0, %s196
    %s197 = sphi 0, %s194
    %s198 = sphi 0, %s197
    %s214 = sphi 0, %s198
    %s222 = sphi 0, %s224
    %s225 = sphi 0, %s222
    %s226 = sphi 0, %s225
    %s242 = sphi 0, %s226
    %s250 = sphi 0, %s252
    %s253 = sphi 0, %s250
    %s254 = sphi 0, %s253
    %s270 = sphi 0, %s254
  $region4: #{self_attention3d.2} parent=0 // loop_header_branch
    %19 = sbr.rel (%p17) target = $region8
  $region5: #{self_attention3d.2} parent=0 // loop_body
    %s21 = ssub.s32 %s16, 1
    %s22 = ssub.s32 %s16, 2
    %s29 = sadd.s32 1, %s24
    %p30 = scmp.ge.s32.totalorder %s29, 1
    %s31 = scalar_select %p30, 0, %s29
    %s32 = sadd.s32 1, %s23
    %s33 = scalar_select %p30, %s32, %s23
    %p34 = scmp.ge.s32.totalorder %s33, 2
    %s35 = scalar_select %p34, 0, %s33
    %s36 = ssub.s32 %s23, %s35
    %s37 = ssub.s32 %s24, %s31
    %s38 = sor.u32 %s36, %s37
    %p39 = scmp.eq.s32.totalorder %s38, 0
    %s41 = sadd.s32 %s40, 1
    %s42 = scalar_select %p39, %s40, %s41
    %p45 = pneg %p39
    %p46 = scmp.eq.s32.totalorder %s16, 1
    %p47 = por %p45, %p46
    %p48 = scmp.ne.s32.totalorder %s40, %s43
    %p49 = scmp.eq.s32.totalorder %s16, 0
    %p50 = por %p48, %p49
    %p51 = scmp.ne.s32.totalorder %s40, %s43
    %p52 = scmp.eq.s32.totalorder %s21, 1
    %p53 = por %p51, %p52
    %p54 = scmp.ne.s32.totalorder %s43, %s44
    %p55 = scmp.eq.s32.totalorder %s21, 0
    %p56 = por %p54, %p55
    %p57 = scmp.ne.s32.totalorder %s43, %s44
    %p58 = scmp.eq.s32.totalorder %s22, 1
    %p59 = por %p57, %p58
    %p61 = scmp.ne.s32.totalorder %s44, %s60
    %p62 = scmp.eq.s32.totalorder %s22, 0
    %p63 = por %p61, %p62
    %s65 = sadd.s32 %s64, 1
    %p68 = scmp.eq.s32.totalorder %s16, 1
    %p69 = scmp.ne.s32.totalorder %s64, %s66
    %p70 = scmp.eq.s32.totalorder %s16, 0
    %p71 = por %p69, %p70
    %p72 = scmp.ne.s32.totalorder %s64, %s66
    %p73 = scmp.eq.s32.totalorder %s21, 1
    %p74 = por %p72, %p73
    %p75 = scmp.ne.s32.totalorder %s66, %s67
    %p76 = scmp.eq.s32.totalorder %s21, 0
    %p77 = por %p75, %p76
    %p78 = scmp.ne.s32.totalorder %s66, %s67
    %p79 = scmp.eq.s32.totalorder %s22, 1
    %p80 = por %p78, %p79
    %p82 = scmp.ne.s32.totalorder %s67, %s81
    %p83 = scmp.eq.s32.totalorder %s22, 0
    %p84 = por %p82, %p83
    %s86 = sadd.s32 %s85, 1
    %p89 = scmp.eq.s32.totalorder %s16, 1
    %p90 = scmp.ne.s32.totalorder %s85, %s87
    %p91 = scmp.eq.s32.totalorder %s16, 0
    %p92 = por %p90, %p91
    %p93 = scmp.ne.s32.totalorder %s85, %s87
    %p94 = scmp.eq.s32.totalorder %s21, 1
    %p95 = por %p93, %p94
    %p96 = scmp.ne.s32.totalorder %s87, %s88
    %p97 = scmp.eq.s32.totalorder %s21, 0
    %p98 = por %p96, %p97
    %p99 = scmp.ne.s32.totalorder %s87, %s88
    %p100 = scmp.eq.s32.totalorder %s22, 1
    %p101 = por %p99, %p100
    %p103 = scmp.ne.s32.totalorder %s88, %s102
    %p104 = scmp.eq.s32.totalorder %s22, 0
    %p105 = por %p103, %p104
    %s107 = sadd.s32 %s106, 1
    %p110 = scmp.eq.s32.totalorder %s16, 1
    %p111 = scmp.ne.s32.totalorder %s106, %s108
    %p112 = scmp.eq.s32.totalorder %s16, 0
    %p113 = por %p111, %p112
    %p114 = scmp.ne.s32.totalorder %s106, %s108
    %p115 = scmp.eq.s32.totalorder %s21, 1
    %p116 = por %p114, %p115
    %p117 = scmp.ne.s32.totalorder %s108, %s109
    %p118 = scmp.eq.s32.totalorder %s21, 0
    %p119 = por %p117, %p118
    %p120 = scmp.ne.s32.totalorder %s108, %s109
    %p121 = scmp.eq.s32.totalorder %s22, 1
    %p122 = por %p120, %p121
    %p124 = scmp.ne.s32.totalorder %s109, %s123
    %p125 = scmp.eq.s32.totalorder %s22, 0
    %p126 = por %p124, %p125
    %s128 = sadd.s32 %s127, 1
    %p131 = scmp.eq.s32.totalorder %s16, 1
    %p132 = scmp.ne.s32.totalorder %s127, %s129
    %p133 = scmp.eq.s32.totalorder %s16, 0
    %p134 = por %p132, %p133
    %p135 = scmp.ne.s32.totalorder %s127, %s129
    %p136 = scmp.eq.s32.totalorder %s21, 1
    %p137 = por %p135, %p136
    %p138 = scmp.ne.s32.totalorder %s129, %s130
    %p139 = scmp.eq.s32.totalorder %s21, 0
    %p140 = por %p138, %p139
    %p141 = scmp.ne.s32.totalorder %s129, %s130
    %p142 = scmp.eq.s32.totalorder %s22, 1
    %p143 = por %p141, %p142
    %p145 = scmp.ne.s32.totalorder %s130, %s144
    %p146 = scmp.eq.s32.totalorder %s22, 0
    %p147 = por %p145, %p146
    %s149 = sadd.s32 %s148, 1
    %p152 = scmp.eq.s32.totalorder %s16, 1
    %p153 = scmp.ne.s32.totalorder %s148, %s150
    %p154 = scmp.eq.s32.totalorder %s16, 0
    %p155 = por %p153, %p154
    %p156 = scmp.ne.s32.totalorder %s148, %s150
    %p157 = scmp.eq.s32.totalorder %s21, 1
    %p158 = por %p156, %p157
    %p159 = scmp.ne.s32.totalorder %s150, %s151
    %p160 = scmp.eq.s32.totalorder %s21, 0
    %p161 = por %p159, %p160
    %p162 = scmp.ne.s32.totalorder %s150, %s151
    %p163 = scmp.eq.s32.totalorder %s22, 1
    %p164 = por %p162, %p163
    %p166 = scmp.ne.s32.totalorder %s151, %s165
    %p167 = scmp.eq.s32.totalorder %s22, 0
    %p168 = por %p166, %p167
    %s170 = sadd.s32 %s169, 1
    %p173 = scmp.eq.s32.totalorder %s16, 1
    %p174 = scmp.ne.s32.totalorder %s169, %s171
    %p175 = scmp.eq.s32.totalorder %s16, 0
    %p176 = por %p174, %p175
    %p177 = scmp.ne.s32.totalorder %s169, %s171
    %p178 = scmp.eq.s32.totalorder %s21, 1
    %p179 = por %p177, %p178
    %p180 = scmp.ne.s32.totalorder %s171, %s172
    %p181 = scmp.eq.s32.totalorder %s21, 0
    %p182 = por %p180, %p181
    %p183 = scmp.ne.s32.totalorder %s171, %s172
    %p184 = scmp.eq.s32.totalorder %s22, 1
    %p185 = por %p183, %p184
    %p187 = scmp.ne.s32.totalorder %s172, %s186
    %p188 = scmp.eq.s32.totalorder %s22, 0
    %p189 = por %p187, %p188
    %s190 = ssub.s32 %s23, %s35
    %s191 = ssub.s32 %s24, %s31
    %s192 = sor.u32 %s190, %s191
    %p193 = scmp.eq.s32.totalorder %s192, 0
    %s195 = sadd.s32 %s194, 1
    %s196 = scalar_select %p193, %s194, %s195
    %p199 = pneg %p193
    %p200 = scmp.eq.s32.totalorder %s16, 1
    %p201 = por %p199, %p200
    %p202 = scmp.ne.s32.totalorder %s194, %s197
    %p203 = scmp.eq.s32.totalorder %s16, 0
    %p204 = por %p202, %p203
    %p205 = scmp.ne.s32.totalorder %s194, %s197
    %p206 = scmp.eq.s32.totalorder %s21, 1
    %p207 = por %p205, %p206
    %p208 = scmp.ne.s32.totalorder %s197, %s198
    %p209 = scmp.eq.s32.totalorder %s21, 0
    %p210 = por %p208, %p209
    %p211 = scmp.ne.s32.totalorder %s197, %s198
    %p212 = scmp.eq.s32.totalorder %s22, 1
    %p213 = por %p211, %p212
    %p215 = scmp.ne.s32.totalorder %s198, %s214
    %p216 = scmp.eq.s32.totalorder %s22, 0
    %p217 = por %p215, %p216
    %s218 = ssub.s32 %s23, %s35
    %s219 = ssub.s32 %s24, %s31
    %s220 = sor.u32 %s218, %s219
    %p221 = scmp.eq.s32.totalorder %s220, 0
    %s223 = sadd.s32 %s222, 1
    %s224 = scalar_select %p221, %s222, %s223
    %p227 = pneg %p221
    %p228 = scmp.eq.s32.totalorder %s16, 1
    %p229 = por %p227, %p228
    %p230 = scmp.ne.s32.totalorder %s222, %s225
    %p231 = scmp.eq.s32.totalorder %s16, 0
    %p232 = por %p230, %p231
    %p233 = scmp.ne.s32.totalorder %s222, %s225
    %p234 = scmp.eq.s32.totalorder %s21, 1
    %p235 = por %p233, %p234
    %p236 = scmp.ne.s32.totalorder %s225, %s226
    %p237 = scmp.eq.s32.totalorder %s21, 0
    %p238 = por %p236, %p237
    %p239 = scmp.ne.s32.totalorder %s225, %s226
    %p240 = scmp.eq.s32.totalorder %s22, 1
    %p241 = por %p239, %p240
    %p243 = scmp.ne.s32.totalorder %s226, %s242
    %p244 = scmp.eq.s32.totalorder %s22, 0
    %p245 = por %p243, %p244
    %s246 = ssub.s32 %s23, %s35
    %s247 = ssub.s32 %s24, %s31
    %s248 = sor.u32 %s246, %s247
    %p249 = scmp.eq.s32.totalorder %s248, 0
    %s251 = sadd.s32 %s250, 1
    %s252 = scalar_select %p249, %s250, %s251
    %p255 = pneg %p249
    %p256 = scmp.eq.s32.totalorder %s16, 1
    %p257 = por %p255, %p256
    %p258 = scmp.ne.s32.totalorder %s250, %s253
    %p259 = scmp.eq.s32.totalorder %s16, 0
    %p260 = por %p258, %p259
    %p261 = scmp.ne.s32.totalorder %s250, %s253
    %p262 = scmp.eq.s32.totalorder %s21, 1
    %p263 = por %p261, %p262
    %p264 = scmp.ne.s32.totalorder %s253, %s254
    %p265 = scmp.eq.s32.totalorder %s21, 0
    %p266 = por %p264, %p265
    %p267 = scmp.ne.s32.totalorder %s253, %s254
    %p268 = scmp.eq.s32.totalorder %s22, 1
    %p269 = por %p267, %p268
    %p271 = scmp.ne.s32.totalorder %s254, %s270
    %p272 = scmp.eq.s32.totalorder %s22, 0
    %p273 = por %p271, %p272
    %p274 = scmp.le.s32.totalorder 1, %s16
    %p275 = scmp.lt.s32.totalorder %s16, 3
    %p276 = pnand %p274, %p275
    %p277 = pneg %p276
    // Predicated region
    $region9: #{self_attention3d.2} parent=5 // pred_check
      _
    $region10: #{self_attention3d.2} parent=5 // pred_check_branch
      %279 = sbr.rel (%p276) target = $region12
    $region11: #{self_attention3d.2} parent=5 // pred_region
      %s280 = ssub.s32 %s16, 1
      // Predicated region
      $region13: #{self_attention3d.2} parent=11 // pred_check
        %p281 = pneg %p77
      $region14: #{self_attention3d.2} parent=11 // pred_check_branch
        %283 = sbr.rel (%p281) target = $region16
      $region15: #{self_attention3d.2} parent=11 // pred_region
        _
      $region16: #{self_attention3d.2} parent=11 // pred_fallthru
        _
      // Predicated region
      $region17: #{self_attention3d.2} parent=11 // pred_check
        %p284 = pneg %p98
      $region18: #{self_attention3d.2} parent=11 // pred_check_branch
        %286 = sbr.rel (%p284) target = $region20
      $region19: #{self_attention3d.2} parent=11 // pred_region
        _
      $region20: #{self_attention3d.2} parent=11 // pred_fallthru
        _
      // Predicated region
      $region21: #{self_attention3d.2} parent=11 // pred_check
        %p287 = pneg %p119
      $region22: #{self_attention3d.2} parent=11 // pred_check_branch
        %289 = sbr.rel (%p287) target = $region24
      $region23: #{self_attention3d.2} parent=11 // pred_region
        _
      $region24: #{self_attention3d.2} parent=11 // pred_fallthru
        _
      // Predicated region
      $region25: #{self_attention3d.2} parent=11 // pred_check
        %p290 = pneg %p140
      $region26: #{self_attention3d.2} parent=11 // pred_check_branch
        %292 = sbr.rel (%p290) target = $region28
      $region27: #{self_attention3d.2} parent=11 // pred_region
        _
      $region28: #{self_attention3d.2} parent=11 // pred_fallthru
        _
      // Predicated region
      $region29: #{self_attention3d.2} parent=11 // pred_check
        %p293 = pneg %p161
      $region30: #{self_attention3d.2} parent=11 // pred_check_branch
        %295 = sbr.rel (%p293) target = $region32
      $region31: #{self_attention3d.2} parent=11 // pred_region
        _
      $region32: #{self_attention3d.2} parent=11 // pred_fallthru
        _
      // Predicated region
      $region33: #{self_attention3d.2} parent=11 // pred_check
        %p296 = pneg %p182
      $region34: #{self_attention3d.2} parent=11 // pred_check_branch
        %298 = sbr.rel (%p296) target = $region36
      $region35: #{self_attention3d.2} parent=11 // pred_region
        _
      $region36: #{self_attention3d.2} parent=11 // pred_fallthru
        _
    $region12: #{self_attention3d.2} parent=5 // pred_fallthru
      _
    %p299 = scmp.lt.s32.totalorder %s16, 2
    // Predicated region
    $region37: #{self_attention3d.2} parent=5 // pred_check
      %p300 = pneg %p299
    $region38: #{self_attention3d.2} parent=5 // pred_check_branch
      %302 = sbr.rel (%p300) target = $region40
    $region39: #{self_attention3d.2} parent=5 // pred_region
      // Predicated region
      $region41: #{self_attention3d.2} parent=39 // pred_check
        %p303 = pneg %p50
      $region42: #{self_attention3d.2} parent=39 // pred_check_branch
        %305 = sbr.rel (%p303) target = $region44
      $region43: #{self_attention3d.2} parent=39 // pred_region
        %s306 = smul.u32 8, %s24
        %p307 = scmp.lt.s32.totalorder %s23, 1
        %s308 = scalar_select %p307, %s23, 1
        %p309 = scmp.lt.s32.totalorder %s306, 7
        %s310 = scalar_select %p309, %s306, 7
        %s311 = smul.addr %s308, 8
        %s312 = sadd.s32 %s310, %s311
        %s313 = smul.addr %s312, 4
        %s314 = scalar_lea.vmem %s0, %s313
        %s315 = smul.u32 8, %s24
      $region44: #{self_attention3d.2} parent=39 // pred_fallthru
        _
    $region40: #{self_attention3d.2} parent=5 // pred_fallthru
      _
    %p316 = scmp.le.s32.totalorder 1, %s16
    %p317 = scmp.lt.s32.totalorder %s16, 3
    %p318 = pnand %p316, %p317
    %p319 = pneg %p318
    // Predicated region
    $region45: #{self_attention3d.2} parent=5 // pred_check
      _
    $region46: #{self_attention3d.2} parent=5 // pred_check_branch
      %321 = sbr.rel (%p318) target = $region48
    $region47: #{self_attention3d.2} parent=5 // pred_region
      %s322 = ssub.s32 %s16, 1
      %s323 = smul.u32 8, %s26
      %p324 = scmp.lt.s32.totalorder %s25, 1
      %s325 = scalar_select %p324, %s25, 1
      %p326 = scmp.lt.s32.totalorder %s323, 7
      %s327 = scalar_select %p326, %s323, 7
      %s328 = smul.addr %s325, 8
      %s329 = sadd.s32 %s327, %s328
      %s330 = smul.addr %s329, 4
      %s331 = scalar_lea.vmem %s0, %s330
      %p332 = pneg %p56
      %p333 = pneg %p53
      %p334 = pneg %p77
      %p335 = pneg %p74
      %p336 = pneg %p98
      %p337 = pneg %p95
      %p338 = pneg %p119
      %p339 = pneg %p116
      %p340 = pneg %p140
      %p341 = pneg %p137
      %p342 = pneg %p161
      %p343 = pneg %p158
      %p344 = pneg %p182
      %p345 = pneg %p179
      %p346 = pneg %p210
      %p347 = pneg %p207
      %s348 = smul.u32 8, %s26
      %p349 = scmp.lt.s32.totalorder %s25, 1
      %s350 = scalar_select %p349, %s25, 1
      %p351 = scmp.lt.s32.totalorder %s348, 7
      %s352 = scalar_select %p351, %s348, 7
      %s353 = smul.addr %s350, 8
      %s354 = sadd.s32 %s352, %s353
      %s355 = smul.addr %s354, 4
      %s356 = scalar_lea.vmem %s7, %s355
      %p357 = pneg %p238
      %p358 = pneg %p235
      %s359 = smul.u32 8, %s26
      %p360 = scmp.lt.s32.totalorder %s25, 1
      %s361 = scalar_select %p360, %s25, 1
      %p362 = scmp.lt.s32.totalorder %s359, 7
      %s363 = scalar_select %p362, %s359, 7
      %s364 = smul.addr %s361, 8
      %s365 = sadd.s32 %s363, %s364
      %s366 = smul.addr %s365, 4
      %s367 = scalar_lea.vmem %s8, %s366
      %p368 = pneg %p266
      %p369 = pneg %p263
      %s370 = smul.u32 8, %s26
      %p371 = scmp.lt.s32.totalorder %s25, 1
      %s372 = scalar_select %p371, %s25, 1
      %p373 = scmp.lt.s32.totalorder %s370, 7
      %s374 = scalar_select %p373, %s370, 7
      %s375 = smul.addr %s372, 8
      %s376 = sadd.s32 %s374, %s375
      %s377 = smul.addr %s376, 4
      %s378 = scalar_lea.vmem %s9, %s377
      %s379 = smul.u32 8, %s26
      %p380 = scmp.lt.s32.totalorder %s25, 1
      %s381 = scalar_select %p380, %s25, 1
      %p382 = scmp.lt.s32.totalorder %s379, 7
      %s383 = scalar_select %p382, %s379, 7
      %s384 = smul.addr %s381, 8
      %s385 = sadd.s32 %s383, %s384
      %s386 = smul.addr %s385, 4
      %s387 = scalar_lea.vmem %s0, %s386
      %s388 = smul.u32 8, %s26
      %s389 = smul.u32 8, %s26
      %p390 = scmp.lt.s32.totalorder %s25, 1
      %s391 = scalar_select %p390, %s25, 1
      %p392 = scmp.lt.s32.totalorder %s389, 7
      %s393 = scalar_select %p392, %s389, 7
      %s394 = smul.addr %s391, 8
      %s395 = sadd.s32 %s393, %s394
      %s396 = smul.addr %s395, 4
      %s397 = scalar_lea.vmem %s7, %s396
      %s398 = smul.u32 8, %s26
      %s399 = smul.u32 8, %s26
      %p400 = scmp.lt.s32.totalorder %s25, 1
      %s401 = scalar_select %p400, %s25, 1
      %p402 = scmp.lt.s32.totalorder %s399, 7
      %s403 = scalar_select %p402, %s399, 7
      %s404 = smul.addr %s401, 8
      %s405 = sadd.s32 %s403, %s404
      %s406 = smul.addr %s405, 4
      %s407 = scalar_lea.vmem %s8, %s406
      %s408 = smul.u32 8, %s26
      %s409 = smul.u32 8, %s26
      %p410 = scmp.lt.s32.totalorder %s25, 1
      %s411 = scalar_select %p410, %s25, 1
      %p412 = scmp.lt.s32.totalorder %s409, 7
      %s413 = scalar_select %p412, %s409, 7
      %s414 = smul.addr %s411, 8
      %s415 = sadd.s32 %s413, %s414
      %s416 = smul.addr %s415, 4
      %s417 = scalar_lea.vmem %s9, %s416
      %s418 = smul.u32 8, %s26
      %v420 = vld [vmem:[%s387] sm:$0xf]
      %v421 = vld [vmem:[%s387 + $0x4] sm:$0xf]
      %v422 = vld [vmem:[%s387 + $0x8] sm:$0xf]
      %v423 = vld [vmem:[%s387 + $0xc] sm:$0xf]
      %v424 = vld [vmem:[%s387 + $0x10] sm:$0xf]
      %v425 = vld [vmem:[%s387 + $0x14] sm:$0xf]
      %v426 = vld [vmem:[%s387 + $0x18] sm:$0xf]
      %v427 = vld [vmem:[%s387 + $0x1c] sm:$0xf]
      %v428 = vld [vmem:[%s1] sm:$0xf]
      %v429 = vld [vmem:[%s1 + $0x4] sm:$0xf]
      %v430 = vld [vmem:[%s2] sm:$0x1]
      %v432 = vlaneseq
      %v433 = vshrl.u32 %v432, 7
      %v434 = vsub.s32 0, %v433
      %v435 = vrot.slane %v430, %v434
      %v445 = vunpack.c.l.b16 %v420
      %v446 = vunpack.c.l.b16 %v421
      %v447 = vunpack.c.l.b16 %v422
      %v448 = vunpack.c.l.b16 %v423
      %v449 = vunpack.c.l.b16 %v424
      %v450 = vunpack.c.l.b16 %v425
      %v451 = vunpack.c.l.b16 %v426
      %v452 = vunpack.c.l.b16 %v427
      %v453 = vpack.c.b16 %v446, %v445
      %v454 = vpack.c.b16 %v448, %v447
      %v455 = vpack.c.b16 %v450, %v449
      %v456 = vpack.c.b16 %v452, %v451
      %v459 = vunpack.c.l.b16 %v428
      %v460 = vunpack.c.l.b16 %v429
      %v461 = vpack.c.b16 %v460, %v459
      %vm463 = vcmask 130048
      %v465 = vsel %vm463, %v453, 0
      %v468 = vsel %vm463, %v454, 0
      %v471 = vsel %vm463, %v455, 0
      %v474 = vsel %vm463, %v456, 0
      %476 = vmatprep.subr.bf16.mxu0 0
      %477 = vmatpush1.bf16.msra.mxu0 0
      %478 = vmatprep.subr.bf16.mxu0 0
      %479 = vmatpush1.bf16.msra.mxu0 0
      %480 = vmatprep.subr.bf16.mxu0 0
      %481 = vmatpush1.bf16.msra.mxu0 0
      %482 = vmatprep.subr.bf16.mxu0 0
      %483 = vmatpush1.bf16.msra.mxu0 0
      %484 = vmatprep.subr.bf16.mxu0 0
      %485 = vmatpush1.bf16.msra.mxu0 0
      %486 = vmatprep.subr.bf16.mxu0 0
      %487 = vmatpush1.bf16.msra.mxu0 0
      %488 = vmatprep.subr.bf16.mxu0 0
      %489 = vmatpush1.bf16.msra.mxu0 0
      %490 = vmatprep.subr.bf16.mxu0 0
      %491 = vmatpush1.bf16.msra.mxu0 %v461
      %492 = vmatprep.subr.bf16.mxu0 0
      %493 = vmatpush2.bf16.msra.mxu0 0
      %494 = vmatprep.subr.bf16.mxu0 0
      %495 = vmatpush2.bf16.msra.mxu0 0
      %496 = vmatprep.subr.bf16.mxu0 0
      %497 = vmatpush2.bf16.msra.mxu0 0
      %498 = vmatprep.subr.bf16.mxu0 0
      %499 = vmatpush2.bf16.msra.mxu0 0
      %500 = vmatprep.subr.bf16.mxu0 0
      %501 = vmatpush2.bf16.msra.mxu0 0
      %502 = vmatprep.subr.bf16.mxu0 0
      %503 = vmatpush2.bf16.msra.mxu0 0
      %504 = vmatprep.subr.bf16.mxu0 0
      %505 = vmatpush2.bf16.msra.mxu0 0
      %506 = vmatprep.subr.bf16.mxu0 0
      %507 = vmatpush2.bf16.msra.mxu0 0
      %508 = vmatprep.mubr.bf16.mxu0 0
      %509 = vmatmul.mubr.bf16.gmra.mxu0 %v465
      %v510 = vpop.f32.mrf.mxu0
      %v511 = vadd.f32 %v435, %v510
      %v512 = vpop.f32.mrf.mxu0
      %v513 = vpop.f32.mrf.mxu0
      %v514 = vadd.f32 %v435, %v513
      %v515 = vpop.f32.mrf.mxu0
      %516 = vmatprep.mubr.bf16.mxu0 0
      %517 = vmatmul.mubr.bf16.gmra.mxu0 %v468
      %v518 = vpop.f32.mrf.mxu0
      %v519 = vadd.f32 %v435, %v518
      %v520 = vpop.f32.mrf.mxu0
      %v521 = vpop.f32.mrf.mxu0
      %v522 = vadd.f32 %v435, %v521
      %v523 = vpop.f32.mrf.mxu0
      %524 = vmatprep.mubr.bf16.mxu0 0
      %525 = vmatmul.mubr.bf16.gmra.mxu0 %v471
      %v526 = vpop.f32.mrf.mxu0
      %v527 = vadd.f32 %v435, %v526
      %v528 = vpop.f32.mrf.mxu0
      %v529 = vpop.f32.mrf.mxu0
      %v530 = vadd.f32 %v435, %v529
      %v531 = vpop.f32.mrf.mxu0
      %532 = vmatprep.mubr.bf16.mxu0 0
      %533 = vmatmul.mubr.bf16.gmra.mxu0 %v474
      %v534 = vpop.f32.mrf.mxu0
      %v535 = vadd.f32 %v435, %v534
      %v536 = vpop.f32.mrf.mxu0
      %v537 = vpop.f32.mrf.mxu0
      %v538 = vadd.f32 %v435, %v537
      %v539 = vpop.f32.mrf.mxu0
      %540 = vdwg.mxu0
      %v541 = vld [vmem:[%s3] sm:$0xf]
      %v542 = vld [vmem:[%s3 + $0x4] sm:$0xf]
      %v543 = vld [vmem:[%s4] sm:$0x1]
      %v545 = vlaneseq
      %v546 = vshrl.u32 %v545, 7
      %v547 = vsub.s32 0, %v546
      %v548 = vrot.slane %v543, %v547
      %v552 = vunpack.c.l.b16 %v541
      %v553 = vunpack.c.l.b16 %v542
      %v554 = vpack.c.b16 %v553, %v552
      %556 = vmatprep.subr.bf16.mxu0 0
      %557 = vmatpush1.bf16.msra.mxu0 0
      %558 = vmatprep.subr.bf16.mxu0 0
      %559 = vmatpush1.bf16.msra.mxu0 0
      %560 = vmatprep.subr.bf16.mxu0 0
      %561 = vmatpush1.bf16.msra.mxu0 0
      %562 = vmatprep.subr.bf16.mxu0 0
      %563 = vmatpush1.bf16.msra.mxu0 0
      %564 = vmatprep.subr.bf16.mxu0 0
      %565 = vmatpush1.bf16.msra.mxu0 0
      %566 = vmatprep.subr.bf16.mxu0 0
      %567 = vmatpush1.bf16.msra.mxu0 0
      %568 = vmatprep.subr.bf16.mxu0 0
      %569 = vmatpush1.bf16.msra.mxu0 0
      %570 = vmatprep.subr.bf16.mxu0 0
      %571 = vmatpush1.bf16.msra.mxu0 %v554
      %572 = vmatprep.subr.bf16.mxu0 0
      %573 = vmatpush2.bf16.msra.mxu0 0
      %574 = vmatprep.subr.bf16.mxu0 0
      %575 = vmatpush2.bf16.msra.mxu0 0
      %576 = vmatprep.subr.bf16.mxu0 0
      %577 = vmatpush2.bf16.msra.mxu0 0
      %578 = vmatprep.subr.bf16.mxu0 0
      %579 = vmatpush2.bf16.msra.mxu0 0
      %580 = vmatprep.subr.bf16.mxu0 0
      %581 = vmatpush2.bf16.msra.mxu0 0
      %582 = vmatprep.subr.bf16.mxu0 0
      %583 = vmatpush2.bf16.msra.mxu0 0
      %584 = vmatprep.subr.bf16.mxu0 0
      %585 = vmatpush2.bf16.msra.mxu0 0
      %586 = vmatprep.subr.bf16.mxu0 0
      %587 = vmatpush2.bf16.msra.mxu0 0
      %588 = vmatprep.mubr.bf16.mxu0 0
      %589 = vmatmul.mubr.bf16.gmra.mxu0 %v465
      %v590 = vpop.f32.mrf.mxu0
      %v591 = vadd.f32 %v548, %v590
      %v592 = vpop.f32.mrf.mxu0
      %v593 = vpop.f32.mrf.mxu0
      %v594 = vadd.f32 %v548, %v593
      %v595 = vpop.f32.mrf.mxu0
      %596 = vmatprep.mubr.bf16.mxu0 0
      %597 = vmatmul.mubr.bf16.gmra.mxu0 %v468
      %v598 = vpop.f32.mrf.mxu0
      %v599 = vadd.f32 %v548, %v598
      %v600 = vpop.f32.mrf.mxu0
      %v601 = vpop.f32.mrf.mxu0
      %v602 = vadd.f32 %v548, %v601
      %v603 = vpop.f32.mrf.mxu0
      %604 = vmatprep.mubr.bf16.mxu0 0
      %605 = vmatmul.mubr.bf16.gmra.mxu0 %v471
      %v606 = vpop.f32.mrf.mxu0
      %v607 = vadd.f32 %v548, %v606
      %v608 = vpop.f32.mrf.mxu0
      %v609 = vpop.f32.mrf.mxu0
      %v610 = vadd.f32 %v548, %v609
      %v611 = vpop.f32.mrf.mxu0
      %612 = vmatprep.mubr.bf16.mxu0 0
      %613 = vmatmul.mubr.bf16.gmra.mxu0 %v474
      %v614 = vpop.f32.mrf.mxu0
      %v615 = vadd.f32 %v548, %v614
      %v616 = vpop.f32.mrf.mxu0
      %v617 = vpop.f32.mrf.mxu0
      %v618 = vadd.f32 %v548, %v617
      %v619 = vpop.f32.mrf.mxu0
      %620 = vdwg.mxu0
      %v621 = vld [vmem:[%s5] sm:$0xf]
      %v622 = vld [vmem:[%s5 + $0x4] sm:$0xf]
      %v623 = vld [vmem:[%s6] sm:$0x1]
      %v625 = vlaneseq
      %v626 = vshrl.u32 %v625, 7
      %v627 = vsub.s32 0, %v626
      %v628 = vrot.slane %v623, %v627
      %v632 = vunpack.c.l.b16 %v621
      %v633 = vunpack.c.l.b16 %v622
      %v634 = vpack.c.b16 %v633, %v632
      %636 = vmatprep.subr.bf16.mxu0 0
      %637 = vmatpush1.bf16.msra.mxu0 0
      %638 = vmatprep.subr.bf16.mxu0 0
      %639 = vmatpush1.bf16.msra.mxu0 0
      %640 = vmatprep.subr.bf16.mxu0 0
      %641 = vmatpush1.bf16.msra.mxu0 0
      %642 = vmatprep.subr.bf16.mxu0 0
      %643 = vmatpush1.bf16.msra.mxu0 0
      %644 = vmatprep.subr.bf16.mxu0 0
      %645 = vmatpush1.bf16.msra.mxu0 0
      %646 = vmatprep.subr.bf16.mxu0 0
      %647 = vmatpush1.bf16.msra.mxu0 0
      %648 = vmatprep.subr.bf16.mxu0 0
      %649 = vmatpush1.bf16.msra.mxu0 0
      %650 = vmatprep.subr.bf16.mxu0 0
      %651 = vmatpush1.bf16.msra.mxu0 %v634
      %652 = vmatprep.subr.bf16.mxu0 0
      %653 = vmatpush2.bf16.msra.mxu0 0
      %654 = vmatprep.subr.bf16.mxu0 0
      %655 = vmatpush2.bf16.msra.mxu0 0
      %656 = vmatprep.subr.bf16.mxu0 0
      %657 = vmatpush2.bf16.msra.mxu0 0
      %658 = vmatprep.subr.bf16.mxu0 0
      %659 = vmatpush2.bf16.msra.mxu0 0
      %660 = vmatprep.subr.bf16.mxu0 0
      %661 = vmatpush2.bf16.msra.mxu0 0
      %662 = vmatprep.subr.bf16.mxu0 0
      %663 = vmatpush2.bf16.msra.mxu0 0
      %664 = vmatprep.subr.bf16.mxu0 0
      %665 = vmatpush2.bf16.msra.mxu0 0
      %666 = vmatprep.subr.bf16.mxu0 0
      %667 = vmatpush2.bf16.msra.mxu0 0
      %668 = vmatprep.mubr.bf16.mxu0 0
      %669 = vmatmul.mubr.bf16.gmra.mxu0 %v465
      %v670 = vpop.f32.mrf.mxu0
      %v671 = vadd.f32 %v628, %v670
      %v672 = vpop.f32.mrf.mxu0
      %v673 = vpop.f32.mrf.mxu0
      %v674 = vadd.f32 %v628, %v673
      %v675 = vpop.f32.mrf.mxu0
      %676 = vmatprep.mubr.bf16.mxu0 0
      %677 = vmatmul.mubr.bf16.gmra.mxu0 %v468
      %v678 = vpop.f32.mrf.mxu0
      %v679 = vadd.f32 %v628, %v678
      %v680 = vpop.f32.mrf.mxu0
      %v681 = vpop.f32.mrf.mxu0
      %v682 = vadd.f32 %v628, %v681
      %v683 = vpop.f32.mrf.mxu0
      %684 = vmatprep.mubr.bf16.mxu0 0
      %685 = vmatmul.mubr.bf16.gmra.mxu0 %v471
      %v686 = vpop.f32.mrf.mxu0
      %v687 = vadd.f32 %v628, %v686
      %v688 = vpop.f32.mrf.mxu0
      %v689 = vpop.f32.mrf.mxu0
      %v690 = vadd.f32 %v628, %v689
      %v691 = vpop.f32.mrf.mxu0
      %692 = vmatprep.mubr.bf16.mxu0 0
      %693 = vmatmul.mubr.bf16.gmra.mxu0 %v474
      %v694 = vpop.f32.mrf.mxu0
      %v695 = vadd.f32 %v628, %v694
      %v696 = vpop.f32.mrf.mxu0
      %v697 = vpop.f32.mrf.mxu0
      %v698 = vadd.f32 %v628, %v697
      %v699 = vpop.f32.mrf.mxu0
      %700 = vdwg.mxu0
      %v701 = vpack.c.bf16 %v514, %v511
      %v702 = vpack.c.bf16 %v522, %v519
      %v703 = vpack.c.bf16 %v530, %v527
      %v704 = vpack.c.bf16 %v538, %v535
      %v709 = vunpack.c.l.b16 %v701
      %v710 = vunpack.c.h.b16 %v701
      %v711 = vunpack.c.l.b16 %v702
      %v712 = vunpack.c.h.b16 %v702
      %v713 = vunpack.c.l.b16 %v703
      %v714 = vunpack.c.h.b16 %v703
      %v715 = vunpack.c.l.b16 %v704
      %v716 = vunpack.c.h.b16 %v704
      %v717 = vpack.c.b16 %v709, %v709
      %v718 = vpack.c.b16 %v710, %v710
      %v719 = vpack.c.b16 %v711, %v711
      %v720 = vpack.c.b16 %v712, %v712
      %v721 = vpack.c.b16 %v713, %v713
      %v722 = vpack.c.b16 %v714, %v714
      %v723 = vpack.c.b16 %v715, %v715
      %v724 = vpack.c.b16 %v716, %v716
      %vm733 = vcmask 11264
      %734 = vst.msk [vmem:[%s397] sm:$0xf] %vm733, %v717
      %735 = vst.msk [vmem:[%s397 + $0x4] sm:$0xf] %vm733, %v718
      %736 = vst.msk [vmem:[%s397 + $0x8] sm:$0xf] %vm733, %v719
      %737 = vst.msk [vmem:[%s397 + $0xc] sm:$0xf] %vm733, %v720
      %738 = vst.msk [vmem:[%s397 + $0x10] sm:$0xf] %vm733, %v721
      %739 = vst.msk [vmem:[%s397 + $0x14] sm:$0xf] %vm733, %v722
      %740 = vst.msk [vmem:[%s397 + $0x18] sm:$0xf] %vm733, %v723
      %741 = vst.msk [vmem:[%s397 + $0x1c] sm:$0xf] %vm733, %v724
      %v742 = vpack.c.bf16 %v594, %v591
      %v743 = vpack.c.bf16 %v602, %v599
      %v744 = vpack.c.bf16 %v610, %v607
      %v745 = vpack.c.bf16 %v618, %v615
      %v750 = vunpack.c.l.b16 %v742
      %v751 = vunpack.c.h.b16 %v742
      %v752 = vunpack.c.l.b16 %v743
      %v753 = vunpack.c.h.b16 %v743
      %v754 = vunpack.c.l.b16 %v744
      %v755 = vunpack.c.h.b16 %v744
      %v756 = vunpack.c.l.b16 %v745
      %v757 = vunpack.c.h.b16 %v745
      %v758 = vpack.c.b16 %v750, %v750
      %v759 = vpack.c.b16 %v751, %v751
      %v760 = vpack.c.b16 %v752, %v752
      %v761 = vpack.c.b16 %v753, %v753
      %v762 = vpack.c.b16 %v754, %v754
      %v763 = vpack.c.b16 %v755, %v755
      %v764 = vpack.c.b16 %v756, %v756
      %v765 = vpack.c.b16 %v757, %v757
      %774 = vst.msk [vmem:[%s407] sm:$0xf] %vm733, %v758
      %775 = vst.msk [vmem:[%s407 + $0x4] sm:$0xf] %vm733, %v759
      %776 = vst.msk [vmem:[%s407 + $0x8] sm:$0xf] %vm733, %v760
      %777 = vst.msk [vmem:[%s407 + $0xc] sm:$0xf] %vm733, %v761
      %778 = vst.msk [vmem:[%s407 + $0x10] sm:$0xf] %vm733, %v762
      %779 = vst.msk [vmem:[%s407 + $0x14] sm:$0xf] %vm733, %v763
      %780 = vst.msk [vmem:[%s407 + $0x18] sm:$0xf] %vm733, %v764
      %781 = vst.msk [vmem:[%s407 + $0x1c] sm:$0xf] %vm733, %v765
      %v782 = vpack.c.bf16 %v674, %v671
      %v783 = vpack.c.bf16 %v682, %v679
      %v784 = vpack.c.bf16 %v690, %v687
      %v785 = vpack.c.bf16 %v698, %v695
      %v790 = vunpack.c.l.b16 %v782
      %v791 = vunpack.c.h.b16 %v782
      %v792 = vunpack.c.l.b16 %v783
      %v793 = vunpack.c.h.b16 %v783
      %v794 = vunpack.c.l.b16 %v784
      %v795 = vunpack.c.h.b16 %v784
      %v796 = vunpack.c.l.b16 %v785
      %v797 = vunpack.c.h.b16 %v785
      %v798 = vpack.c.b16 %v790, %v790
      %v799 = vpack.c.b16 %v791, %v791
      %v800 = vpack.c.b16 %v792, %v792
      %v801 = vpack.c.b16 %v793, %v793
      %v802 = vpack.c.b16 %v794, %v794
      %v803 = vpack.c.b16 %v795, %v795
      %v804 = vpack.c.b16 %v796, %v796
      %v805 = vpack.c.b16 %v797, %v797
      %vm814 = vcmask 125952
      %815 = vst.msk [vmem:[%s417] sm:$0xf] %vm814, %v798
      %816 = vst.msk [vmem:[%s417 + $0x4] sm:$0xf] %vm814, %v799
      %817 = vst.msk [vmem:[%s417 + $0x8] sm:$0xf] %vm814, %v800
      %818 = vst.msk [vmem:[%s417 + $0xc] sm:$0xf] %vm814, %v801
      %819 = vst.msk [vmem:[%s417 + $0x10] sm:$0xf] %vm814, %v802
      %820 = vst.msk [vmem:[%s417 + $0x14] sm:$0xf] %vm814, %v803
      %821 = vst.msk [vmem:[%s417 + $0x18] sm:$0xf] %vm814, %v804
      %822 = vst.msk [vmem:[%s417 + $0x1c] sm:$0xf] %vm814, %v805
      %s823 = smul.u32 8, %s26
      %p824 = scmp.lt.s32.totalorder %s25, 1
      %s825 = scalar_select %p824, %s25, 1
      %p826 = scmp.lt.s32.totalorder %s823, 7
      %s827 = scalar_select %p826, %s823, 7
      %s828 = smul.addr %s825, 8
      %s829 = sadd.s32 %s827, %s828
      %s830 = smul.addr %s829, 4
      %s831 = scalar_lea.vmem %s7, %s830
      %s832 = smul.u32 8, %s26
      %p833 = scmp.lt.s32.totalorder %s25, 1
      %s834 = scalar_select %p833, %s25, 1
      %p835 = scmp.lt.s32.totalorder %s832, 7
      %s836 = scalar_select %p835, %s832, 7
      %s837 = smul.addr %s834, 8
      %s838 = sadd.s32 %s836, %s837
      %s839 = smul.addr %s838, 4
      %s840 = scalar_lea.vmem %s8, %s839
      %s841 = smul.u32 8, %s26
      %p842 = scmp.lt.s32.totalorder %s25, 1
      %s843 = scalar_select %p842, %s25, 1
      %p844 = scmp.lt.s32.totalorder %s841, 7
      %s845 = scalar_select %p844, %s841, 7
      %s846 = smul.addr %s843, 8
      %s847 = sadd.s32 %s845, %s846
      %s848 = smul.addr %s847, 4
      %s849 = scalar_lea.vmem %s9, %s848
      // Predicated region
      $region49: #{self_attention3d.2} parent=47 // pred_check
        %p850 = pneg %p207
      $region50: #{self_attention3d.2} parent=47 // pred_check_branch
        %852 = sbr.rel (%p850) target = $region52
      $region51: #{self_attention3d.2} parent=47 // pred_region
        %s853 = smul.u32 8, %s26
      $region52: #{self_attention3d.2} parent=47 // pred_fallthru
        _
      // Predicated region
      $region53: #{self_attention3d.2} parent=47 // pred_check
        %p854 = pneg %p235
      $region54: #{self_attention3d.2} parent=47 // pred_check_branch
        %856 = sbr.rel (%p854) target = $region56
      $region55: #{self_attention3d.2} parent=47 // pred_region
        %s857 = smul.u32 8, %s26
      $region56: #{self_attention3d.2} parent=47 // pred_fallthru
        _
      // Predicated region
      $region57: #{self_attention3d.2} parent=47 // pred_check
        %p858 = pneg %p263
      $region58: #{self_attention3d.2} parent=47 // pred_check_branch
        %860 = sbr.rel (%p858) target = $region60
      $region59: #{self_attention3d.2} parent=47 // pred_region
        %s861 = smul.u32 8, %s26
      $region60: #{self_attention3d.2} parent=47 // pred_fallthru
        _
    $region48: #{self_attention3d.2} parent=5 // pred_fallthru
      _
    %p862 = scmp.le.s32.totalorder 2, %s16
    // Predicated region
    $region61: #{self_attention3d.2} parent=5 // pred_check
      %p863 = pneg %p862
    $region62: #{self_attention3d.2} parent=5 // pred_check_branch
      %865 = sbr.rel (%p863) target = $region64
    $region63: #{self_attention3d.2} parent=5 // pred_region
      %s866 = ssub.s32 %s16, 2
      // Predicated region
      $region65: #{self_attention3d.2} parent=63 // pred_check
        %p867 = pneg %p213
      $region66: #{self_attention3d.2} parent=63 // pred_check_branch
        %869 = sbr.rel (%p867) target = $region68
      $region67: #{self_attention3d.2} parent=63 // pred_region
        %s870 = smul.u32 8, %s28
        %p871 = scmp.lt.s32.totalorder %s27, 1
        %s872 = scalar_select %p871, %s27, 1
        %p873 = scmp.lt.s32.totalorder %s870, 7
        %s874 = scalar_select %p873, %s870, 7
        %s875 = smul.addr %s872, 8
        %s876 = sadd.s32 %s874, %s875
        %s877 = smul.addr %s876, 4
        %s878 = scalar_lea.vmem %s7, %s877
      $region68: #{self_attention3d.2} parent=63 // pred_fallthru
        _
      // Predicated region
      $region69: #{self_attention3d.2} parent=63 // pred_check
        %p879 = pneg %p241
      $region70: #{self_attention3d.2} parent=63 // pred_check_branch
        %881 = sbr.rel (%p879) target = $region72
      $region71: #{self_attention3d.2} parent=63 // pred_region
        %s882 = smul.u32 8, %s28
        %p883 = scmp.lt.s32.totalorder %s27, 1
        %s884 = scalar_select %p883, %s27, 1
        %p885 = scmp.lt.s32.totalorder %s882, 7
        %s886 = scalar_select %p885, %s882, 7
        %s887 = smul.addr %s884, 8
        %s888 = sadd.s32 %s886, %s887
        %s889 = smul.addr %s888, 4
        %s890 = scalar_lea.vmem %s8, %s889
      $region72: #{self_attention3d.2} parent=63 // pred_fallthru
        _
      // Predicated region
      $region73: #{self_attention3d.2} parent=63 // pred_check
        %p891 = pneg %p269
      $region74: #{self_attention3d.2} parent=63 // pred_check_branch
        %893 = sbr.rel (%p891) target = $region76
      $region75: #{self_attention3d.2} parent=63 // pred_region
        %s894 = smul.u32 8, %s28
        %p895 = scmp.lt.s32.totalorder %s27, 1
        %s896 = scalar_select %p895, %s27, 1
        %p897 = scmp.lt.s32.totalorder %s894, 7
        %s898 = scalar_select %p897, %s894, 7
        %s899 = smul.addr %s896, 8
        %s900 = sadd.s32 %s898, %s899
        %s901 = smul.addr %s900, 4
        %s902 = scalar_lea.vmem %s9, %s901
      $region76: #{self_attention3d.2} parent=63 // pred_fallthru
        _
    $region64: #{self_attention3d.2} parent=5 // pred_fallthru
      _
  $region6: #{self_attention3d.2} parent=0 // loop_footer
    %s20 = sadd.s32 1, %s16
  $region7: #{self_attention3d.2} parent=0 // loop_footer_branch
    %15 = sbr.rel target = $region3
  $region8: #{self_attention3d.2} parent=0 // loop_exit
    _

// kernel: self_attention3d.3
$region0: #{self_attention3d.3}
  #allocation0 [shape = 'u32[]', space=smem, size = 0x4, offset = 0x4, fixed_abs, tag = 'smem constant byte address 0x4 - core index']
  #allocation1 [shape = 'u32[144,128]{1,0:T(1,128)}', space=vmem, size = 0x12000, scoped, tag = 'internal scratch']
  #allocation2 [shape = 'f32[64,1]{1,0:T(8,128)}', space=vmem, size = 0x8000, scoped, tag = 'scratch operand']
  #allocation3 [shape = 'f32[64,1]{1,0:T(8,128)}', space=vmem, size = 0x8000, scoped, tag = 'scratch operand']
  #allocation4 [shape = 'f32[64,16]{1,0:T(8,128)}', space=vmem, size = 0x8000, scoped, tag = 'scratch operand']
  #allocation5 [shape = 'f32[1,1]{1,0:T(1,128)S(6)}', space=smem, size = 0x200, scoped, tag = 'scoped memory for self_attention3d.3']
  %s0 = inlined_call_operand.<no memory space> [shape: f32[1,1], index: 0, kind: input, shape index: {}]
  %s1 = inlined_call_operand.vmem [shape: bf16[2,64,2], index: 1, kind: input, shape index: {}]
  %s2 = inlined_call_operand.vmem [shape: bf16[2,64,16], index: 2, kind: input, shape index: {}]
  %s3 = inlined_call_operand.vmem [shape: bf16[2,64,2], index: 3, kind: input, shape index: {}]
  %s4 = inlined_call_operand.vmem [shape: bf16[2,64,16], index: 4, kind: input, shape index: {}]
  %s5 = inlined_call_operand.hbm [shape: f32[2,64,16], index: 5, kind: output, shape index: {}]
  %s6 = sld [smem:[#allocation0]]
  $region61: #{self_attention3d.3} parent=0
    _
  %s8 = ssub.s32 1, %s6
  %s9 = scalar_select 0, %s8, %s6
  %10 = sst [smem:[#allocation5]] %s0
  $region1: #{self_attention3d.3} parent=0
    #allocation6 [shape = 'u8[65536]{0}', space=vmem, size = 0x10000, scoped, tag = 'output window, operand 0']
    #allocation7 [shape = 's32[2]{0}', space=sflag, size = 0x8, scoped, tag = 'scoped memory for self_attention3d.3']
    %11 = vsyncpa [#allocation7], 0
    %s12 = scalar_lea.sflag [#allocation7], 1
    %13 = vsyncpa %s12, 0
    loop: start=0, step=1, limit=4
    $region2: #{self_attention3d.3} parent=1 // loop_pre_header
      _
    $region3: #{self_attention3d.3} parent=1 // loop_header
      %s15 = sphi 0, %s19
      %p16 = scmp.ge.s32.totalorder %s15, 4
      %s22 = sphi 0, %s41
      %s23 = sphi 0, %s37
      %s24 = sphi 0, %s33
      %s25 = sphi 0, %s22
      %s26 = sphi 0, %s23
      %s27 = sphi 0, %s24
      %s28 = sphi 0, %s25
      %s29 = sphi 0, %s26
      %s30 = sphi 0, %s27
      %s42 = sphi 0, %s42
      %s44 = sphi 0, %s42
      %s45 = sphi 0, %s44
      %s59 = sphi 0, %s45
      %s67 = sphi 0, %s69
      %s70 = sphi 0, %s67
      %s71 = sphi 0, %s70
      %s87 = sphi 0, %s71
      %s95 = sphi 0, %s97
      %s98 = sphi 0, %s95
      %s99 = sphi 0, %s98
      %s115 = sphi 0, %s99
      %s123 = sphi 0, %s125
      %s126 = sphi 0, %s123
      %s127 = sphi 0, %s126
      %s143 = sphi 0, %s127
      %s151 = sphi 0, %s153
      %s154 = sphi 0, %s151
      %s155 = sphi 0, %s154
      %s171 = sphi 0, %s155
      %s179 = sphi 0, %s181
      %s182 = sphi 0, %s179
      %s183 = sphi 0, %s182
      %s199 = sphi 0, %s183
    $region4: #{self_attention3d.3} parent=1 // loop_header_branch
      %18 = sbr.rel (%p16) target = $region8
    $region5: #{self_attention3d.3} parent=1 // loop_body
      %s20 = ssub.s32 %s15, 1
      %s21 = ssub.s32 %s15, 2
      %s31 = sadd.s32 1, %s24
      %p32 = scmp.ge.s32.totalorder %s31, 1
      %s33 = scalar_select %p32, 0, %s31
      %s34 = sadd.s32 1, %s23
      %s35 = scalar_select %p32, %s34, %s23
      %p36 = scmp.ge.s32.totalorder %s35, 1
      %s37 = scalar_select %p36, 0, %s35
      %s38 = sadd.s32 1, %s22
      %s39 = scalar_select %p36, %s38, %s22
      %p40 = scmp.ge.s32.totalorder %s39, 2
      %s41 = scalar_select %p40, 0, %s39
      %s43 = sadd.s32 %s42, 1
      %p46 = scmp.eq.s32.totalorder %s15, 1
      %p47 = scmp.ne.s32.totalorder %s42, %s44
      %p48 = scmp.eq.s32.totalorder %s15, 0
      %p49 = por %p47, %p48
      %p50 = scmp.ne.s32.totalorder %s42, %s44
      %p51 = scmp.eq.s32.totalorder %s20, 1
      %p52 = por %p50, %p51
      %p53 = scmp.ne.s32.totalorder %s44, %s45
      %p54 = scmp.eq.s32.totalorder %s20, 0
      %p55 = por %p53, %p54
      %p56 = scmp.ne.s32.totalorder %s44, %s45
      %p57 = scmp.eq.s32.totalorder %s21, 1
      %p58 = por %p56, %p57
      %p60 = scmp.ne.s32.totalorder %s45, %s59
      %p61 = scmp.eq.s32.totalorder %s21, 0
      %p62 = por %p60, %p61
      %s63 = ssub.s32 %s22, %s41
      %s64 = ssub.s32 %s23, %s37
      %s65 = sor.u32 %s63, %s64
      %p66 = scmp.eq.s32.totalorder %s65, 0
      %s68 = sadd.s32 %s67, 1
      %s69 = scalar_select %p66, %s67, %s68
      %p72 = pneg %p66
      %p73 = scmp.eq.s32.totalorder %s15, 1
      %p74 = por %p72, %p73
      %p75 = scmp.ne.s32.totalorder %s67, %s70
      %p76 = scmp.eq.s32.totalorder %s15, 0
      %p77 = por %p75, %p76
      %p78 = scmp.ne.s32.totalorder %s67, %s70
      %p79 = scmp.eq.s32.totalorder %s20, 1
      %p80 = por %p78, %p79
      %p81 = scmp.ne.s32.totalorder %s70, %s71
      %p82 = scmp.eq.s32.totalorder %s20, 0
      %p83 = por %p81, %p82
      %p84 = scmp.ne.s32.totalorder %s70, %s71
      %p85 = scmp.eq.s32.totalorder %s21, 1
      %p86 = por %p84, %p85
      %p88 = scmp.ne.s32.totalorder %s71, %s87
      %p89 = scmp.eq.s32.totalorder %s21, 0
      %p90 = por %p88, %p89
      %s91 = ssub.s32 %s22, %s41
      %s92 = ssub.s32 %s23, %s37
      %s93 = sor.u32 %s91, %s92
      %p94 = scmp.eq.s32.totalorder %s93, 0
      %s96 = sadd.s32 %s95, 1
      %s97 = scalar_select %p94, %s95, %s96
      %p100 = pneg %p94
      %p101 = scmp.eq.s32.totalorder %s15, 1
      %p102 = por %p100, %p101
      %p103 = scmp.ne.s32.totalorder %s95, %s98
      %p104 = scmp.eq.s32.totalorder %s15, 0
      %p105 = por %p103, %p104
      %p106 = scmp.ne.s32.totalorder %s95, %s98
      %p107 = scmp.eq.s32.totalorder %s20, 1
      %p108 = por %p106, %p107
      %p109 = scmp.ne.s32.totalorder %s98, %s99
      %p110 = scmp.eq.s32.totalorder %s20, 0
      %p111 = por %p109, %p110
      %p112 = scmp.ne.s32.totalorder %s98, %s99
      %p113 = scmp.eq.s32.totalorder %s21, 1
      %p114 = por %p112, %p113
      %p116 = scmp.ne.s32.totalorder %s99, %s115
      %p117 = scmp.eq.s32.totalorder %s21, 0
      %p118 = por %p116, %p117
      %s119 = ssub.s32 %s22, %s41
      %s120 = ssub.s32 %s24, %s33
      %s121 = sor.u32 %s119, %s120
      %p122 = scmp.eq.s32.totalorder %s121, 0
      %s124 = sadd.s32 %s123, 1
      %s125 = scalar_select %p122, %s123, %s124
      %p128 = pneg %p122
      %p129 = scmp.eq.s32.totalorder %s15, 1
      %p130 = por %p128, %p129
      %p131 = scmp.ne.s32.totalorder %s123, %s126
      %p132 = scmp.eq.s32.totalorder %s15, 0
      %p133 = por %p131, %p132
      %p134 = scmp.ne.s32.totalorder %s123, %s126
      %p135 = scmp.eq.s32.totalorder %s20, 1
      %p136 = por %p134, %p135
      %p137 = scmp.ne.s32.totalorder %s126, %s127
      %p138 = scmp.eq.s32.totalorder %s20, 0
      %p139 = por %p137, %p138
      %p140 = scmp.ne.s32.totalorder %s126, %s127
      %p141 = scmp.eq.s32.totalorder %s21, 1
      %p142 = por %p140, %p141
      %p144 = scmp.ne.s32.totalorder %s127, %s143
      %p145 = scmp.eq.s32.totalorder %s21, 0
      %p146 = por %p144, %p145
      %s147 = ssub.s32 %s22, %s41
      %s148 = ssub.s32 %s24, %s33
      %s149 = sor.u32 %s147, %s148
      %p150 = scmp.eq.s32.totalorder %s149, 0
      %s152 = sadd.s32 %s151, 1
      %s153 = scalar_select %p150, %s151, %s152
      %p156 = pneg %p150
      %p157 = scmp.eq.s32.totalorder %s15, 1
      %p158 = por %p156, %p157
      %p159 = scmp.ne.s32.totalorder %s151, %s154
      %p160 = scmp.eq.s32.totalorder %s15, 0
      %p161 = por %p159, %p160
      %p162 = scmp.ne.s32.totalorder %s151, %s154
      %p163 = scmp.eq.s32.totalorder %s20, 1
      %p164 = por %p162, %p163
      %p165 = scmp.ne.s32.totalorder %s154, %s155
      %p166 = scmp.eq.s32.totalorder %s20, 0
      %p167 = por %p165, %p166
      %p168 = scmp.ne.s32.totalorder %s154, %s155
      %p169 = scmp.eq.s32.totalorder %s21, 1
      %p170 = por %p168, %p169
      %p172 = scmp.ne.s32.totalorder %s155, %s171
      %p173 = scmp.eq.s32.totalorder %s21, 0
      %p174 = por %p172, %p173
      %s175 = ssub.s32 %s22, %s41
      %s176 = ssub.s32 %s23, %s37
      %s177 = sor.u32 %s175, %s176
      %p178 = scmp.eq.s32.totalorder %s177, 0
      %s180 = sadd.s32 %s179, 1
      %s181 = scalar_select %p178, %s179, %s180
      %p184 = pneg %p178
      %p185 = scmp.eq.s32.totalorder %s15, 1
      %p186 = por %p184, %p185
      %p187 = scmp.ne.s32.totalorder %s179, %s182
      %p188 = scmp.eq.s32.totalorder %s15, 0
      %p189 = por %p187, %p188
      %p190 = scmp.ne.s32.totalorder %s179, %s182
      %p191 = scmp.eq.s32.totalorder %s20, 1
      %p192 = por %p190, %p191
      %p193 = scmp.ne.s32.totalorder %s182, %s183
      %p194 = scmp.eq.s32.totalorder %s20, 0
      %p195 = por %p193, %p194
      %p196 = scmp.ne.s32.totalorder %s182, %s183
      %p197 = scmp.eq.s32.totalorder %s21, 1
      %p198 = por %p196, %p197
      %p200 = scmp.ne.s32.totalorder %s183, %s199
      %p201 = scmp.eq.s32.totalorder %s21, 0
      %p202 = por %p200, %p201
      %p203 = scmp.le.s32.totalorder 1, %s15
      %p204 = scmp.lt.s32.totalorder %s15, 3
      %p205 = pnand %p203, %p204
      %p206 = pneg %p205
      // Predicated region
      $region9: #{self_attention3d.3} parent=5 // pred_check
        _
      $region10: #{self_attention3d.3} parent=5 // pred_check_branch
        %208 = sbr.rel (%p205) target = $region12
      $region11: #{self_attention3d.3} parent=5 // pred_region
        %s209 = ssub.s32 %s15, 1
        // Predicated region
        $region13: #{self_attention3d.3} parent=11 // pred_check
          %p210 = pneg %p55
        $region14: #{self_attention3d.3} parent=11 // pred_check_branch
          %212 = sbr.rel (%p210) target = $region16
        $region15: #{self_attention3d.3} parent=11 // pred_region
          _
        $region16: #{self_attention3d.3} parent=11 // pred_fallthru
          _
      $region12: #{self_attention3d.3} parent=5 // pred_fallthru
        _
      %p213 = scmp.lt.s32.totalorder %s15, 2
      // Predicated region
      $region17: #{self_attention3d.3} parent=5 // pred_check
        %p214 = pneg %p213
      $region18: #{self_attention3d.3} parent=5 // pred_check_branch
        %216 = sbr.rel (%p214) target = $region20
      $region19: #{self_attention3d.3} parent=5 // pred_region
        // Predicated region
        $region21: #{self_attention3d.3} parent=19 // pred_check
          %p217 = pneg %p77
        $region22: #{self_attention3d.3} parent=19 // pred_check_branch
          %219 = sbr.rel (%p217) target = $region24
        $region23: #{self_attention3d.3} parent=19 // pred_region
          %s220 = smul.u32 8, %s23
          %p221 = scmp.lt.s32.totalorder %s22, 1
          %s222 = scalar_select %p221, %s22, 1
          %p223 = scmp.lt.s32.totalorder %s220, 7
          %s224 = scalar_select %p223, %s220, 7
          %s225 = smul.addr %s222, 8
          %s226 = sadd.s32 %s224, %s225
          %s227 = smul.addr %s226, 4
          %s228 = scalar_lea.vmem %s1, %s227
          %s229 = smul.u32 8, %s23
        $region24: #{self_attention3d.3} parent=19 // pred_fallthru
          _
        // Predicated region
        $region25: #{self_attention3d.3} parent=19 // pred_check
          %p230 = pneg %p105
        $region26: #{self_attention3d.3} parent=19 // pred_check_branch
          %232 = sbr.rel (%p230) target = $region28
        $region27: #{self_attention3d.3} parent=19 // pred_region
          %s233 = smul.u32 8, %s23
          %p234 = scmp.lt.s32.totalorder %s22, 1
          %s235 = scalar_select %p234, %s22, 1
          %p236 = scmp.lt.s32.totalorder %s233, 7
          %s237 = scalar_select %p236, %s233, 7
          %s238 = smul.addr %s235, 8
          %s239 = sadd.s32 %s237, %s238
          %s240 = smul.addr %s239, 4
          %s241 = scalar_lea.vmem %s2, %s240
          %s242 = smul.u32 8, %s23
        $region28: #{self_attention3d.3} parent=19 // pred_fallthru
          _
        // Predicated region
        $region29: #{self_attention3d.3} parent=19 // pred_check
          %p243 = pneg %p133
        $region30: #{self_attention3d.3} parent=19 // pred_check_branch
          %245 = sbr.rel (%p243) target = $region32
        $region31: #{self_attention3d.3} parent=19 // pred_region
          %s246 = smul.u32 8, %s24
          %p247 = scmp.lt.s32.totalorder %s22, 1
          %s248 = scalar_select %p247, %s22, 1
          %p249 = scmp.lt.s32.totalorder %s246, 7
          %s250 = scalar_select %p249, %s246, 7
          %s251 = smul.addr %s248, 8
          %s252 = sadd.s32 %s250, %s251
          %s253 = smul.addr %s252, 4
          %s254 = scalar_lea.vmem %s3, %s253
          %s255 = smul.u32 8, %s24
        $region32: #{self_attention3d.3} parent=19 // pred_fallthru
          _
        // Predicated region
        $region33: #{self_attention3d.3} parent=19 // pred_check
          %p256 = pneg %p161
        $region34: #{self_attention3d.3} parent=19 // pred_check_branch
          %258 = sbr.rel (%p256) target = $region36
        $region35: #{self_attention3d.3} parent=19 // pred_region
          %s259 = smul.u32 8, %s24
          %p260 = scmp.lt.s32.totalorder %s22, 1
          %s261 = scalar_select %p260, %s22, 1
          %p262 = scmp.lt.s32.totalorder %s259, 7
          %s263 = scalar_select %p262, %s259, 7
          %s264 = smul.addr %s261, 8
          %s265 = sadd.s32 %s263, %s264
          %s266 = smul.addr %s265, 4
          %s267 = scalar_lea.vmem %s4, %s266
          %s268 = smul.u32 8, %s24
        $region36: #{self_attention3d.3} parent=19 // pred_fallthru
          _
      $region20: #{self_attention3d.3} parent=5 // pred_fallthru
        _
      %p269 = scmp.le.s32.totalorder 1, %s15
      %p270 = scmp.lt.s32.totalorder %s15, 3
      %p271 = pnand %p269, %p270
      %p272 = pneg %p271
      // Predicated region
      $region37: #{self_attention3d.3} parent=5 // pred_check
        _
      $region38: #{self_attention3d.3} parent=5 // pred_check_branch
        %274 = sbr.rel (%p271) target = $region40
      $region39: #{self_attention3d.3} parent=5 // pred_region
        %s275 = ssub.s32 %s15, 1
        %p276 = pneg %p55
        %p277 = pneg %p52
        %s278 = smul.u32 8, %s26
        %p279 = scmp.lt.s32.totalorder %s25, 1
        %s280 = scalar_select %p279, %s25, 1
        %p281 = scmp.lt.s32.totalorder %s278, 7
        %s282 = scalar_select %p281, %s278, 7
        %s283 = smul.addr %s280, 8
        %s284 = sadd.s32 %s282, %s283
        %s285 = smul.addr %s284, 4
        %s286 = scalar_lea.vmem %s1, %s285
        %p287 = pneg %p83
        %p288 = pneg %p80
        %s289 = smul.u32 8, %s26
        %p290 = scmp.lt.s32.totalorder %s25, 1
        %s291 = scalar_select %p290, %s25, 1
        %p292 = scmp.lt.s32.totalorder %s289, 7
        %s293 = scalar_select %p292, %s289, 7
        %s294 = smul.addr %s291, 8
        %s295 = sadd.s32 %s293, %s294
        %s296 = smul.addr %s295, 4
        %s297 = scalar_lea.vmem %s2, %s296
        %p298 = pneg %p111
        %p299 = pneg %p108
        %s300 = smul.u32 8, %s27
        %p301 = scmp.lt.s32.totalorder %s25, 1
        %s302 = scalar_select %p301, %s25, 1
        %p303 = scmp.lt.s32.totalorder %s300, 7
        %s304 = scalar_select %p303, %s300, 7
        %s305 = smul.addr %s302, 8
        %s306 = sadd.s32 %s304, %s305
        %s307 = smul.addr %s306, 4
        %s308 = scalar_lea.vmem %s3, %s307
        %p309 = pneg %p139
        %p310 = pneg %p136
        %s311 = smul.u32 8, %s27
        %p312 = scmp.lt.s32.totalorder %s25, 1
        %s313 = scalar_select %p312, %s25, 1
        %p314 = scmp.lt.s32.totalorder %s311, 7
        %s315 = scalar_select %p314, %s311, 7
        %s316 = smul.addr %s313, 8
        %s317 = sadd.s32 %s315, %s316
        %s318 = smul.addr %s317, 4
        %s319 = scalar_lea.vmem %s4, %s318
        %p320 = pneg %p167
        %p321 = pneg %p164
        %p322 = pneg %p195
        %p323 = pneg %p192
        %s324 = sand.u32 %s182, 1
        %s325 = scalar_lea.sflag [#allocation7], %s324
        %s326 = sand.u32 %s182, 1
        %s327 = smul.addr %s326, 64
        %s328 = scalar_lea.vmem [#allocation6], %s327
        %s329 = smul.u32 8, %s26
        %p330 = scmp.lt.s32.totalorder %s25, 1
        %s331 = scalar_select %p330, %s25, 1
        %p332 = scmp.lt.s32.totalorder %s329, 7
        %s333 = scalar_select %p332, %s329, 7
        %s334 = smul.addr %s331, 8
        %s335 = sadd.s32 %s333, %s334
        %s336 = smul.addr %s335, 4
        %s337 = scalar_lea.vmem %s1, %s336
        %s338 = smul.u32 8, %s26
        %s339 = smul.u32 8, %s26
        %p340 = scmp.lt.s32.totalorder %s25, 1
        %s341 = scalar_select %p340, %s25, 1
        %p342 = scmp.lt.s32.totalorder %s339, 7
        %s343 = scalar_select %p342, %s339, 7
        %s344 = smul.addr %s341, 8
        %s345 = sadd.s32 %s343, %s344
        %s346 = smul.addr %s345, 4
        %s347 = scalar_lea.vmem %s2, %s346
        %s348 = smul.u32 8, %s26
        %s349 = smul.u32 8, %s27
        %p350 = scmp.lt.s32.totalorder %s25, 1
        %s351 = scalar_select %p350, %s25, 1
        %p352 = scmp.lt.s32.totalorder %s349, 7
        %s353 = scalar_select %p352, %s349, 7
        %s354 = smul.addr %s351, 8
        %s355 = sadd.s32 %s353, %s354
        %s356 = smul.addr %s355, 4
        %s357 = scalar_lea.vmem %s3, %s356
        %s358 = smul.u32 8, %s27
        %s359 = smul.u32 8, %s27
        %p360 = scmp.lt.s32.totalorder %s25, 1
        %s361 = scalar_select %p360, %s25, 1
        %p362 = scmp.lt.s32.totalorder %s359, 7
        %s363 = scalar_select %p362, %s359, 7
        %s364 = smul.addr %s361, 8
        %s365 = sadd.s32 %s363, %s364
        %s366 = smul.addr %s365, 4
        %s367 = scalar_lea.vmem %s4, %s366
        %s368 = smul.u32 8, %s27
        %s369 = smul.u32 8, %s26
        %p371 = scmp.eq.s32.totalorder %s27, 0
        // Predicated region
        $region41: #{self_attention3d.3} parent=39 // pred_check
          %p372 = pneg %p371
        $region42: #{self_attention3d.3} parent=39 // pred_check_branch
          %374 = sbr.rel (%p372) target = $region44
        $region43: #{self_attention3d.3} parent=39 // pred_region
          %vm375 = vcmask 7168
          %376 = vst.msk [vmem:[#allocation2] sm:$0xff] %vm375, -1e+30
          %377 = vst.msk [vmem:[#allocation2 + $0x8] sm:$0xff] %vm375, -1e+30
          %378 = vst.msk [vmem:[#allocation2 + $0x10] sm:$0xff] %vm375, -1e+30
          %379 = vst.msk [vmem:[#allocation2 + $0x18] sm:$0xff] %vm375, -1e+30
          %380 = vst.msk [vmem:[#allocation2 + $0x20] sm:$0xff] %vm375, -1e+30
          %381 = vst.msk [vmem:[#allocation2 + $0x28] sm:$0xff] %vm375, -1e+30
          %382 = vst.msk [vmem:[#allocation2 + $0x30] sm:$0xff] %vm375, -1e+30
          %383 = vst.msk [vmem:[#allocation2 + $0x38] sm:$0xff] %vm375, -1e+30
          %384 = vst.msk [vmem:[#allocation3] sm:$0xff] %vm375, 0.0
          %385 = vst.msk [vmem:[#allocation3 + $0x8] sm:$0xff] %vm375, 0.0
          %386 = vst.msk [vmem:[#allocation3 + $0x10] sm:$0xff] %vm375, 0.0
          %387 = vst.msk [vmem:[#allocation3 + $0x18] sm:$0xff] %vm375, 0.0
          %388 = vst.msk [vmem:[#allocation3 + $0x20] sm:$0xff] %vm375, 0.0
          %389 = vst.msk [vmem:[#allocation3 + $0x28] sm:$0xff] %vm375, 0.0
          %390 = vst.msk [vmem:[#allocation3 + $0x30] sm:$0xff] %vm375, 0.0
          %391 = vst.msk [vmem:[#allocation3 + $0x38] sm:$0xff] %vm375, 0.0
          %vm392 = vcmask 130048
          %393 = vst.msk [vmem:[#allocation4] sm:$0xff] %vm392, 0.0
          %394 = vst.msk [vmem:[#allocation4 + $0x8] sm:$0xff] %vm392, 0.0
          %395 = vst.msk [vmem:[#allocation4 + $0x10] sm:$0xff] %vm392, 0.0
          %396 = vst.msk [vmem:[#allocation4 + $0x18] sm:$0xff] %vm392, 0.0
          %397 = vst.msk [vmem:[#allocation4 + $0x20] sm:$0xff] %vm392, 0.0
          %398 = vst.msk [vmem:[#allocation4 + $0x28] sm:$0xff] %vm392, 0.0
          %399 = vst.msk [vmem:[#allocation4 + $0x30] sm:$0xff] %vm392, 0.0
          %400 = vst.msk [vmem:[#allocation4 + $0x38] sm:$0xff] %vm392, 0.0
        $region44: #{self_attention3d.3} parent=39 // pred_fallthru
          _
        %v401 = vld [vmem:[%s337] sm:$0xf]
        %v402 = vld [vmem:[%s337 + $0x4] sm:$0xf]
        %v403 = vld [vmem:[%s337 + $0x8] sm:$0xf]
        %v404 = vld [vmem:[%s337 + $0xc] sm:$0xf]
        %v405 = vld [vmem:[%s337 + $0x10] sm:$0xf]
        %v406 = vld [vmem:[%s337 + $0x14] sm:$0xf]
        %v407 = vld [vmem:[%s337 + $0x18] sm:$0xf]
        %v408 = vld [vmem:[%s337 + $0x1c] sm:$0xf]
        %v409 = vld [vmem:[%s357] sm:$0xf]
        %v410 = vld [vmem:[%s357 + $0x4] sm:$0xf]
        %v411 = vld [vmem:[%s357 + $0x8] sm:$0xf]
        %v412 = vld [vmem:[%s357 + $0xc] sm:$0xf]
        %v413 = vld [vmem:[%s357 + $0x10] sm:$0xf]
        %v414 = vld [vmem:[%s357 + $0x14] sm:$0xf]
        %v415 = vld [vmem:[%s357 + $0x18] sm:$0xf]
        %v416 = vld [vmem:[%s357 + $0x1c] sm:$0xf]
        %v425 = vunpack.c.l.b16 %v401
        %v426 = vunpack.c.l.b16 %v402
        %v427 = vunpack.c.l.b16 %v403
        %v428 = vunpack.c.l.b16 %v404
        %v429 = vunpack.c.l.b16 %v405
        %v430 = vunpack.c.l.b16 %v406
        %v431 = vunpack.c.l.b16 %v407
        %v432 = vunpack.c.l.b16 %v408
        %v433 = vpack.c.b16 %v426, %v425
        %v434 = vpack.c.b16 %v428, %v427
        %v435 = vpack.c.b16 %v430, %v429
        %v436 = vpack.c.b16 %v432, %v431
        %v445 = vunpack.c.l.b16 %v409
        %v446 = vunpack.c.l.b16 %v410
        %v447 = vunpack.c.l.b16 %v411
        %v448 = vunpack.c.l.b16 %v412
        %v449 = vunpack.c.l.b16 %v413
        %v450 = vunpack.c.l.b16 %v414
        %v451 = vunpack.c.l.b16 %v415
        %v452 = vunpack.c.l.b16 %v416
        %v453 = vpack.c.b16 %v446, %v445
        %v454 = vpack.c.b16 %v448, %v447
        %v455 = vpack.c.b16 %v450, %v449
        %v456 = vpack.c.b16 %v452, %v451
        %vm457 = vcmask 15360
        %v459 = vsel %vm457, %v433, 0
        %v462 = vsel %vm457, %v434, 0
        %v465 = vsel %vm457, %v435, 0
        %v468 = vsel %vm457, %v436, 0
        %v471 = vsel %vm457, %v453, 0
        %v474 = vsel %vm457, %v454, 0
        %v477 = vsel %vm457, %v455, 0
        %v480 = vsel %vm457, %v456, 0
        %482 = vmatprep.subr.bf16.mxu0 0
        %483 = vmatpush1.bf16.xpose.msra.mxu0 0
        %484 = vmatprep.subr.bf16.mxu0 0
        %485 = vmatpush1.bf16.xpose.msra.mxu0 0
        %486 = vmatprep.subr.bf16.mxu0 0
        %487 = vmatpush1.bf16.xpose.msra.mxu0 0
        %488 = vmatprep.subr.bf16.mxu0 0
        %489 = vmatpush1.bf16.xpose.msra.mxu0 0
        %490 = vmatprep.subr.bf16.mxu0 0
        %491 = vmatpush1.bf16.xpose.msra.mxu0 %v480
        %492 = vmatprep.subr.bf16.mxu0 0
        %493 = vmatpush1.bf16.xpose.msra.mxu0 %v477
        %494 = vmatprep.subr.bf16.mxu0 0
        %495 = vmatpush1.bf16.xpose.msra.mxu0 %v474
        %496 = vmatprep.subr.bf16.mxu0 0
        %497 = vmatpush1.bf16.xpose.msra.mxu0 %v471
        %498 = vmatprep.subr.bf16.mxu0 0
        %499 = vmatpush2.bf16.xpose.msra.mxu0 0
        %500 = vmatprep.subr.bf16.mxu0 0
        %501 = vmatpush2.bf16.xpose.msra.mxu0 0
        %502 = vmatprep.subr.bf16.mxu0 0
        %503 = vmatpush2.bf16.xpose.msra.mxu0 0
        %504 = vmatprep.subr.bf16.mxu0 0
        %505 = vmatpush2.bf16.xpose.msra.mxu0 0
        %506 = vmatprep.subr.bf16.mxu0 0
        %507 = vmatpush2.bf16.xpose.msra.mxu0 0
        %508 = vmatprep.subr.bf16.mxu0 0
        %509 = vmatpush2.bf16.xpose.msra.mxu0 0
        %510 = vmatprep.subr.bf16.mxu0 0
        %511 = vmatpush2.bf16.xpose.msra.mxu0 0
        %512 = vmatprep.subr.bf16.mxu0 0
        %513 = vmatpush2.bf16.xpose.msra.mxu0 0
        %514 = vmatprep.mubr.bf16.mxu0 0
        %515 = vmatmul.mubr.bf16.gmra.mxu0 %v459
        %v516 = vpop.f32.mrf.mxu0
        %v517 = vadd.f32 0.0, %v516
        %v518 = vpop.f32.mrf.mxu0
        %v519 = vpop.f32.mrf.mxu0
        %v520 = vadd.f32 0.0, %v519
        %v521 = vpop.f32.mrf.mxu0
        %522 = vmatprep.mubr.bf16.mxu0 0
        %523 = vmatmul.mubr.bf16.gmra.mxu0 %v462
        %v524 = vpop.f32.mrf.mxu0
        %v525 = vadd.f32 0.0, %v524
        %v526 = vpop.f32.mrf.mxu0
        %v527 = vpop.f32.mrf.mxu0
        %v528 = vadd.f32 0.0, %v527
        %v529 = vpop.f32.mrf.mxu0
        %530 = vmatprep.mubr.bf16.mxu0 0
        %531 = vmatmul.mubr.bf16.gmra.mxu0 %v465
        %v532 = vpop.f32.mrf.mxu0
        %v533 = vadd.f32 0.0, %v532
        %v534 = vpop.f32.mrf.mxu0
        %v535 = vpop.f32.mrf.mxu0
        %v536 = vadd.f32 0.0, %v535
        %v537 = vpop.f32.mrf.mxu0
        %538 = vmatprep.mubr.bf16.mxu0 0
        %539 = vmatmul.mubr.bf16.gmra.mxu0 %v468
        %v540 = vpop.f32.mrf.mxu0
        %v541 = vadd.f32 0.0, %v540
        %v542 = vpop.f32.mrf.mxu0
        %v543 = vpop.f32.mrf.mxu0
        %v544 = vadd.f32 0.0, %v543
        %v545 = vpop.f32.mrf.mxu0
        %546 = vdwg.mxu0
        %v547 = vld [vmem:[#allocation2] sm:$0xff]
        %v548 = vld [vmem:[#allocation2 + $0x8] sm:$0xff]
        %v549 = vld [vmem:[#allocation2 + $0x10] sm:$0xff]
        %v550 = vld [vmem:[#allocation2 + $0x18] sm:$0xff]
        %v551 = vld [vmem:[#allocation2 + $0x20] sm:$0xff]
        %v552 = vld [vmem:[#allocation2 + $0x28] sm:$0xff]
        %v553 = vld [vmem:[#allocation2 + $0x30] sm:$0xff]
        %v554 = vld [vmem:[#allocation2 + $0x38] sm:$0xff]
        %vm555 = vcmask 523264
        %v556 = vsel %vm555, %v517, -inf
        %557 = vmax.xlane.f32.xlu0 %v556
        %v558 = vpop.xlane.xlu0 %557
        %v559 = vsel %vm555, %v520, -inf
        %560 = vmax.xlane.f32.xlu0 %v559
        %v561 = vpop.xlane.xlu0 %560
        %v562 = vsel %vm555, %v525, -inf
        %563 = vmax.xlane.f32.xlu0 %v562
        %v564 = vpop.xlane.xlu0 %563
        %v565 = vsel %vm555, %v528, -inf
        %566 = vmax.xlane.f32.xlu0 %v565
        %v567 = vpop.xlane.xlu0 %566
        %v568 = vsel %vm555, %v533, -inf
        %569 = vmax.xlane.f32.xlu0 %v568
        %v570 = vpop.xlane.xlu0 %569
        %v571 = vsel %vm555, %v536, -inf
        %572 = vmax.xlane.f32.xlu0 %v571
        %v573 = vpop.xlane.xlu0 %572
        %v574 = vsel %vm555, %v541, -inf
        %575 = vmax.xlane.f32.xlu0 %v574
        %v576 = vpop.xlane.xlu0 %575
        %v577 = vsel %vm555, %v544, -inf
        %578 = vmax.xlane.f32.xlu0 %v577
        %v579 = vpop.xlane.xlu0 %578
        %v580 = vmax.f32 %v547, %v558
        %v581 = vmax.f32 %v548, %v561
        %v582 = vmax.f32 %v549, %v564
        %v583 = vmax.f32 %v550, %v567
        %v584 = vmax.f32 %v551, %v570
        %v585 = vmax.f32 %v552, %v573
        %v586 = vmax.f32 %v553, %v576
        %v587 = vmax.f32 %v554, %v579
        %v588 = vsub.f32 %v547, %v580
        %v589 = vsub.f32 %v548, %v581
        %v590 = vsub.f32 %v549, %v582
        %v591 = vsub.f32 %v550, %v583
        %v592 = vsub.f32 %v551, %v584
        %v593 = vsub.f32 %v552, %v585
        %v594 = vsub.f32 %v553, %v586
        %v595 = vsub.f32 %v554, %v587
        %v596 = vmul.f32 %v588, 1.442695
        %v597 = vpow.pop %v596
        %v598 = vmul.f32 %v589, 1.442695
        %v599 = vpow.pop %v598
        %v600 = vmul.f32 %v590, 1.442695
        %v601 = vpow.pop %v600
        %v602 = vmul.f32 %v591, 1.442695
        %v603 = vpow.pop %v602
        %v604 = vmul.f32 %v592, 1.442695
        %v605 = vpow.pop %v604
        %v606 = vmul.f32 %v593, 1.442695
        %v607 = vpow.pop %v606
        %v608 = vmul.f32 %v594, 1.442695
        %v609 = vpow.pop %v608
        %v610 = vmul.f32 %v595, 1.442695
        %v611 = vpow.pop %v610
        %613 = vset.pattern.permute.xlu0 0
        %614 = vperm.xlu0 %613, %v580
        %v615 = vpop.permute.xlu0 %614
        %618 = vset.pattern.permute.xlu0 0
        %619 = vperm.xlu0 %618, %v581
        %v620 = vpop.permute.xlu0 %619
        %623 = vset.pattern.permute.xlu0 0
        %624 = vperm.xlu0 %623, %v582
        %v625 = vpop.permute.xlu0 %624
        %628 = vset.pattern.permute.xlu0 0
        %629 = vperm.xlu0 %628, %v583
        %v630 = vpop.permute.xlu0 %629
        %633 = vset.pattern.permute.xlu0 0
        %634 = vperm.xlu0 %633, %v584
        %v635 = vpop.permute.xlu0 %634
        %638 = vset.pattern.permute.xlu0 0
        %639 = vperm.xlu0 %638, %v585
        %v640 = vpop.permute.xlu0 %639
        %643 = vset.pattern.permute.xlu0 0
        %644 = vperm.xlu0 %643, %v586
        %v645 = vpop.permute.xlu0 %644
        %648 = vset.pattern.permute.xlu0 0
        %649 = vperm.xlu0 %648, %v587
        %v650 = vpop.permute.xlu0 %649
        %v652 = vsub.f32 %v517, %v615
        %v653 = vsub.f32 %v520, %v620
        %v654 = vsub.f32 %v525, %v625
        %v655 = vsub.f32 %v528, %v630
        %v656 = vsub.f32 %v533, %v635
        %v657 = vsub.f32 %v536, %v640
        %v658 = vsub.f32 %v541, %v645
        %v659 = vsub.f32 %v544, %v650
        %v660 = vmul.f32 %v652, 1.442695
        %v661 = vpow.pop %v660
        %v662 = vmul.f32 %v653, 1.442695
        %v663 = vpow.pop %v662
        %v664 = vmul.f32 %v654, 1.442695
        %v665 = vpow.pop %v664
        %v666 = vmul.f32 %v655, 1.442695
        %v667 = vpow.pop %v666
        %v668 = vmul.f32 %v656, 1.442695
        %v669 = vpow.pop %v668
        %v670 = vmul.f32 %v657, 1.442695
        %v671 = vpow.pop %v670
        %v672 = vmul.f32 %v658, 1.442695
        %v673 = vpow.pop %v672
        %v674 = vmul.f32 %v659, 1.442695
        %v675 = vpow.pop %v674
        %v676 = vld [vmem:[#allocation3] sm:$0xff]
        %v677 = vld [vmem:[#allocation3 + $0x8] sm:$0xff]
        %v678 = vld [vmem:[#allocation3 + $0x10] sm:$0xff]
        %v679 = vld [vmem:[#allocation3 + $0x18] sm:$0xff]
        %v680 = vld [vmem:[#allocation3 + $0x20] sm:$0xff]
        %v681 = vld [vmem:[#allocation3 + $0x28] sm:$0xff]
        %v682 = vld [vmem:[#allocation3 + $0x30] sm:$0xff]
        %v683 = vld [vmem:[#allocation3 + $0x38] sm:$0xff]
        %v684 = vmul.f32 %v597, %v676
        %v685 = vmul.f32 %v599, %v677
        %v686 = vmul.f32 %v601, %v678
        %v687 = vmul.f32 %v603, %v679
        %v688 = vmul.f32 %v605, %v680
        %v689 = vmul.f32 %v607, %v681
        %v690 = vmul.f32 %v609, %v682
        %v691 = vmul.f32 %v611, %v683
        %v692 = vsel %vm555, %v661, 0.0
        %693 = vadd.xlane.f32.xlu0 %v692
        %v694 = vpop.xlane.xlu0 %693
        %v695 = vsel %vm555, %v663, 0.0
        %696 = vadd.xlane.f32.xlu0 %v695
        %v697 = vpop.xlane.xlu0 %696
        %v698 = vsel %vm555, %v665, 0.0
        %699 = vadd.xlane.f32.xlu0 %v698
        %v700 = vpop.xlane.xlu0 %699
        %v701 = vsel %vm555, %v667, 0.0
        %702 = vadd.xlane.f32.xlu0 %v701
        %v703 = vpop.xlane.xlu0 %702
        %v704 = vsel %vm555, %v669, 0.0
        %705 = vadd.xlane.f32.xlu0 %v704
        %v706 = vpop.xlane.xlu0 %705
        %v707 = vsel %vm555, %v671, 0.0
        %708 = vadd.xlane.f32.xlu0 %v707
        %v709 = vpop.xlane.xlu0 %708
        %v710 = vsel %vm555, %v673, 0.0
        %711 = vadd.xlane.f32.xlu0 %v710
        %v712 = vpop.xlane.xlu0 %711
        %v713 = vsel %vm555, %v675, 0.0
        %714 = vadd.xlane.f32.xlu0 %v713
        %v715 = vpop.xlane.xlu0 %714
        %v716 = vadd.f32 %v684, %v694
        %v717 = vadd.f32 %v685, %v697
        %v718 = vadd.f32 %v686, %v700
        %v719 = vadd.f32 %v687, %v703
        %v720 = vadd.f32 %v688, %v706
        %v721 = vadd.f32 %v689, %v709
        %v722 = vadd.f32 %v690, %v712
        %v723 = vadd.f32 %v691, %v715
        %vm724 = vcmask 7168
        %725 = vst.msk [vmem:[#allocation3] sm:$0xff] %vm724, %v716
        %726 = vst.msk [vmem:[#allocation3 + $0x8] sm:$0xff] %vm724, %v717
        %727 = vst.msk [vmem:[#allocation3 + $0x10] sm:$0xff] %vm724, %v718
        %728 = vst.msk [vmem:[#allocation3 + $0x18] sm:$0xff] %vm724, %v719
        %729 = vst.msk [vmem:[#allocation3 + $0x20] sm:$0xff] %vm724, %v720
        %730 = vst.msk [vmem:[#allocation3 + $0x28] sm:$0xff] %vm724, %v721
        %731 = vst.msk [vmem:[#allocation3 + $0x30] sm:$0xff] %vm724, %v722
        %732 = vst.msk [vmem:[#allocation3 + $0x38] sm:$0xff] %vm724, %v723
        %v733 = vld [vmem:[#allocation4] sm:$0xff]
        %v734 = vld [vmem:[#allocation4 + $0x8] sm:$0xff]
        %v735 = vld [vmem:[#allocation4 + $0x10] sm:$0xff]
        %v736 = vld [vmem:[#allocation4 + $0x18] sm:$0xff]
        %v737 = vld [vmem:[#allocation4 + $0x20] sm:$0xff]
        %v738 = vld [vmem:[#allocation4 + $0x28] sm:$0xff]
        %v739 = vld [vmem:[#allocation4 + $0x30] sm:$0xff]
        %v740 = vld [vmem:[#allocation4 + $0x38] sm:$0xff]
        %742 = vset.pattern.permute.xlu0 0
        %743 = vperm.xlu0 %742, %v597
        %v744 = vpop.permute.xlu0 %743
        %747 = vset.pattern.permute.xlu0 0
        %748 = vperm.xlu0 %747, %v599
        %v749 = vpop.permute.xlu0 %748
        %752 = vset.pattern.permute.xlu0 0
        %753 = vperm.xlu0 %752, %v601
        %v754 = vpop.permute.xlu0 %753
        %757 = vset.pattern.permute.xlu0 0
        %758 = vperm.xlu0 %757, %v603
        %v759 = vpop.permute.xlu0 %758
        %762 = vset.pattern.permute.xlu0 0
        %763 = vperm.xlu0 %762, %v605
        %v764 = vpop.permute.xlu0 %763
        %767 = vset.pattern.permute.xlu0 0
        %768 = vperm.xlu0 %767, %v607
        %v769 = vpop.permute.xlu0 %768
        %772 = vset.pattern.permute.xlu0 0
        %773 = vperm.xlu0 %772, %v609
        %v774 = vpop.permute.xlu0 %773
        %777 = vset.pattern.permute.xlu0 0
        %778 = vperm.xlu0 %777, %v611
        %v779 = vpop.permute.xlu0 %778
        %v781 = vmul.f32 %v744, %v733
        %v782 = vmul.f32 %v749, %v734
        %v783 = vmul.f32 %v754, %v735
        %v784 = vmul.f32 %v759, %v736
        %v785 = vmul.f32 %v764, %v737
        %v786 = vmul.f32 %v769, %v738
        %v787 = vmul.f32 %v774, %v739
        %v788 = vmul.f32 %v779, %v740
        %v789 = vpack.c.bf16 %v663, %v661
        %v790 = vpack.c.bf16 %v667, %v665
        %v791 = vpack.c.bf16 %v671, %v669
        %v792 = vpack.c.bf16 %v675, %v673
        %v793 = vld [vmem:[%s367] sm:$0xf]
        %v794 = vld [vmem:[%s367 + $0x4] sm:$0xf]
        %v795 = vld [vmem:[%s367 + $0x8] sm:$0xf]
        %v796 = vld [vmem:[%s367 + $0xc] sm:$0xf]
        %v797 = vld [vmem:[%s367 + $0x10] sm:$0xf]
        %v798 = vld [vmem:[%s367 + $0x14] sm:$0xf]
        %v799 = vld [vmem:[%s367 + $0x18] sm:$0xf]
        %v800 = vld [vmem:[%s367 + $0x1c] sm:$0xf]
        %v809 = vunpack.c.l.b16 %v793
        %v810 = vunpack.c.l.b16 %v794
        %v811 = vunpack.c.l.b16 %v795
        %v812 = vunpack.c.l.b16 %v796
        %v813 = vunpack.c.l.b16 %v797
        %v814 = vunpack.c.l.b16 %v798
        %v815 = vunpack.c.l.b16 %v799
        %v816 = vunpack.c.l.b16 %v800
        %v817 = vpack.c.b16 %v810, %v809
        %v818 = vpack.c.b16 %v812, %v811
        %v819 = vpack.c.b16 %v814, %v813
        %v820 = vpack.c.b16 %v816, %v815
        %v826 = vsel %vm555, %v789, 0
        %v829 = vsel %vm555, %v790, 0
        %v832 = vsel %vm555, %v791, 0
        %v835 = vsel %vm555, %v792, 0
        %837 = vmatprep.subr.bf16.mxu0 0
        %838 = vmatpush1.bf16.msra.mxu0 0
        %839 = vmatprep.subr.bf16.mxu0 0
        %840 = vmatpush1.bf16.msra.mxu0 0
        %841 = vmatprep.subr.bf16.mxu0 0
        %842 = vmatpush1.bf16.msra.mxu0 0
        %843 = vmatprep.subr.bf16.mxu0 0
        %844 = vmatpush1.bf16.msra.mxu0 0
        %845 = vmatprep.subr.bf16.mxu0 0
        %846 = vmatpush1.bf16.msra.mxu0 %v820
        %847 = vmatprep.subr.bf16.mxu0 0
        %848 = vmatpush1.bf16.msra.mxu0 %v819
        %849 = vmatprep.subr.bf16.mxu0 0
        %850 = vmatpush1.bf16.msra.mxu0 %v818
        %851 = vmatprep.subr.bf16.mxu0 0
        %852 = vmatpush1.bf16.msra.mxu0 %v817
        %853 = vmatprep.subr.bf16.mxu0 0
        %854 = vmatpush2.bf16.msra.mxu0 0
        %855 = vmatprep.subr.bf16.mxu0 0
        %856 = vmatpush2.bf16.msra.mxu0 0
        %857 = vmatprep.subr.bf16.mxu0 0
        %858 = vmatpush2.bf16.msra.mxu0 0
        %859 = vmatprep.subr.bf16.mxu0 0
        %860 = vmatpush2.bf16.msra.mxu0 0
        %861 = vmatprep.subr.bf16.mxu0 0
        %862 = vmatpush2.bf16.msra.mxu0 0
        %863 = vmatprep.subr.bf16.mxu0 0
        %864 = vmatpush2.bf16.msra.mxu0 0
        %865 = vmatprep.subr.bf16.mxu0 0
        %866 = vmatpush2.bf16.msra.mxu0 0
        %867 = vmatprep.subr.bf16.mxu0 0
        %868 = vmatpush2.bf16.msra.mxu0 0
        %869 = vmatprep.mubr.bf16.mxu0 0
        %870 = vmatmul.mubr.bf16.gmra.mxu0 %v826
        %v871 = vpop.f32.mrf.mxu0
        %v872 = vadd.f32 0.0, %v871
        %v873 = vpop.f32.mrf.mxu0
        %v874 = vpop.f32.mrf.mxu0
        %v875 = vadd.f32 0.0, %v874
        %v876 = vpop.f32.mrf.mxu0
        %877 = vmatprep.mubr.bf16.mxu0 0
        %878 = vmatmul.mubr.bf16.gmra.mxu0 %v829
        %v879 = vpop.f32.mrf.mxu0
        %v880 = vadd.f32 0.0, %v879
        %v881 = vpop.f32.mrf.mxu0
        %v882 = vpop.f32.mrf.mxu0
        %v883 = vadd.f32 0.0, %v882
        %v884 = vpop.f32.mrf.mxu0
        %885 = vmatprep.mubr.bf16.mxu0 0
        %886 = vmatmul.mubr.bf16.gmra.mxu0 %v832
        %v887 = vpop.f32.mrf.mxu0
        %v888 = vadd.f32 0.0, %v887
        %v889 = vpop.f32.mrf.mxu0
        %v890 = vpop.f32.mrf.mxu0
        %v891 = vadd.f32 0.0, %v890
        %v892 = vpop.f32.mrf.mxu0
        %893 = vmatprep.mubr.bf16.mxu0 0
        %894 = vmatmul.mubr.bf16.gmra.mxu0 %v835
        %v895 = vpop.f32.mrf.mxu0
        %v896 = vadd.f32 0.0, %v895
        %v897 = vpop.f32.mrf.mxu0
        %v898 = vpop.f32.mrf.mxu0
        %v899 = vadd.f32 0.0, %v898
        %v900 = vpop.f32.mrf.mxu0
        %901 = vdwg.mxu0
        %v902 = vadd.f32 %v781, %v872
        %v903 = vadd.f32 %v782, %v875
        %v904 = vadd.f32 %v783, %v880
        %v905 = vadd.f32 %v784, %v883
        %v906 = vadd.f32 %v785, %v888
        %v907 = vadd.f32 %v786, %v891
        %v908 = vadd.f32 %v787, %v896
        %v909 = vadd.f32 %v788, %v899
        %vm910 = vcmask 130048
        %911 = vst.msk [vmem:[#allocation4] sm:$0xff] %vm910, %v902
        %912 = vst.msk [vmem:[#allocation4 + $0x8] sm:$0xff] %vm910, %v903
        %913 = vst.msk [vmem:[#allocation4 + $0x10] sm:$0xff] %vm910, %v904
        %914 = vst.msk [vmem:[#allocation4 + $0x18] sm:$0xff] %vm910, %v905
        %915 = vst.msk [vmem:[#allocation4 + $0x20] sm:$0xff] %vm910, %v906
        %916 = vst.msk [vmem:[#allocation4 + $0x28] sm:$0xff] %vm910, %v907
        %917 = vst.msk [vmem:[#allocation4 + $0x30] sm:$0xff] %vm910, %v908
        %918 = vst.msk [vmem:[#allocation4 + $0x38] sm:$0xff] %vm910, %v909
        %919 = vst.msk [vmem:[#allocation2] sm:$0xff] %vm724, %v580
        %920 = vst.msk [vmem:[#allocation2 + $0x8] sm:$0xff] %vm724, %v581
        %921 = vst.msk [vmem:[#allocation2 + $0x10] sm:$0xff] %vm724, %v582
        %922 = vst.msk [vmem:[#allocation2 + $0x18] sm:$0xff] %vm724, %v583
        %923 = vst.msk [vmem:[#allocation2 + $0x20] sm:$0xff] %vm724, %v584
        %924 = vst.msk [vmem:[#allocation2 + $0x28] sm:$0xff] %vm724, %v585
        %925 = vst.msk [vmem:[#allocation2 + $0x30] sm:$0xff] %vm724, %v586
        %926 = vst.msk [vmem:[#allocation2 + $0x38] sm:$0xff] %vm724, %v587
        // Predicated region
        $region45: #{self_attention3d.3} parent=39 // pred_check
          %p927 = pneg %p371
        $region46: #{self_attention3d.3} parent=39 // pred_check_branch
          %929 = sbr.rel (%p927) target = $region48
        $region47: #{self_attention3d.3} parent=39 // pred_region
          %v930 = vld [vmem:[#allocation3] sm:$0xff]
          %v931 = vld [vmem:[#allocation3 + $0x8] sm:$0xff]
          %v932 = vld [vmem:[#allocation3 + $0x10] sm:$0xff]
          %v933 = vld [vmem:[#allocation3 + $0x18] sm:$0xff]
          %v934 = vld [vmem:[#allocation3 + $0x20] sm:$0xff]
          %v935 = vld [vmem:[#allocation3 + $0x28] sm:$0xff]
          %v936 = vld [vmem:[#allocation3 + $0x30] sm:$0xff]
          %v937 = vld [vmem:[#allocation3 + $0x38] sm:$0xff]
          %v938 = vrcp.pop %v930
          %v939 = vrcp.pop %v931
          %v940 = vrcp.pop %v932
          %v941 = vrcp.pop %v933
          %v942 = vrcp.pop %v934
          %v943 = vrcp.pop %v935
          %v944 = vrcp.pop %v936
          %v945 = vrcp.pop %v937
          %v946 = vld [vmem:[#allocation4] sm:$0xff]
          %v947 = vld [vmem:[#allocation4 + $0x8] sm:$0xff]
          %v948 = vld [vmem:[#allocation4 + $0x10] sm:$0xff]
          %v949 = vld [vmem:[#allocation4 + $0x18] sm:$0xff]
          %v950 = vld [vmem:[#allocation4 + $0x20] sm:$0xff]
          %v951 = vld [vmem:[#allocation4 + $0x28] sm:$0xff]
          %v952 = vld [vmem:[#allocation4 + $0x30] sm:$0xff]
          %v953 = vld [vmem:[#allocation4 + $0x38] sm:$0xff]
          %955 = vset.pattern.permute.xlu0 0
          %956 = vperm.xlu0 %955, %v938
          %v957 = vpop.permute.xlu0 %956
          %960 = vset.pattern.permute.xlu0 0
          %961 = vperm.xlu0 %960, %v939
          %v962 = vpop.permute.xlu0 %961
          %965 = vset.pattern.permute.xlu0 0
          %966 = vperm.xlu0 %965, %v940
          %v967 = vpop.permute.xlu0 %966
          %970 = vset.pattern.permute.xlu0 0
          %971 = vperm.xlu0 %970, %v941
          %v972 = vpop.permute.xlu0 %971
          %975 = vset.pattern.permute.xlu0 0
          %976 = vperm.xlu0 %975, %v942
          %v977 = vpop.permute.xlu0 %976
          %980 = vset.pattern.permute.xlu0 0
          %981 = vperm.xlu0 %980, %v943
          %v982 = vpop.permute.xlu0 %981
          %985 = vset.pattern.permute.xlu0 0
          %986 = vperm.xlu0 %985, %v944
          %v987 = vpop.permute.xlu0 %986
          %990 = vset.pattern.permute.xlu0 0
          %991 = vperm.xlu0 %990, %v945
          %v992 = vpop.permute.xlu0 %991
          %v994 = vmul.f32 %v946, %v957
          %v995 = vmul.f32 %v947, %v962
          %v996 = vmul.f32 %v948, %v967
          %v997 = vmul.f32 %v949, %v972
          %v998 = vmul.f32 %v950, %v977
          %v999 = vmul.f32 %v951, %v982
          %v1000 = vmul.f32 %v952, %v987
          %v1001 = vmul.f32 %v953, %v992
          %s1002 = sld [smem:[#allocation5]]
          %v1003 = vstv %s1002
          %v1004 = vmul.f32 %v1003, %v994
          %v1005 = vmul.f32 %v1003, %v995
          %v1006 = vmul.f32 %v1003, %v996
          %v1007 = vmul.f32 %v1003, %v997
          %v1008 = vmul.f32 %v1003, %v998
          %v1009 = vmul.f32 %v1003, %v999
          %v1010 = vmul.f32 %v1003, %v1000
          %v1011 = vmul.f32 %v1003, %v1001
          %v1012 = vld [vmem:[%s347] sm:$0xf]
          %v1013 = vld [vmem:[%s347 + $0x4] sm:$0xf]
          %v1014 = vld [vmem:[%s347 + $0x8] sm:$0xf]
          %v1015 = vld [vmem:[%s347 + $0xc] sm:$0xf]
          %v1016 = vld [vmem:[%s347 + $0x10] sm:$0xf]
          %v1017 = vld [vmem:[%s347 + $0x14] sm:$0xf]
          %v1018 = vld [vmem:[%s347 + $0x18] sm:$0xf]
          %v1019 = vld [vmem:[%s347 + $0x1c] sm:$0xf]
          %v1020 = vunpack.c.l.bf16 %v1012
          %v1021 = vunpack.c.l.bf16 %v1013
          %v1022 = vunpack.c.l.bf16 %v1014
          %v1023 = vunpack.c.l.bf16 %v1015
          %v1024 = vunpack.c.l.bf16 %v1016
          %v1025 = vunpack.c.l.bf16 %v1017
          %v1026 = vunpack.c.l.bf16 %v1018
          %v1027 = vunpack.c.l.bf16 %v1019
          %v1028 = vadd.f32 %v1004, %v1020
          %v1029 = vadd.f32 %v1005, %v1021
          %v1030 = vadd.f32 %v1006, %v1022
          %v1031 = vadd.f32 %v1007, %v1023
          %v1032 = vadd.f32 %v1008, %v1024
          %v1033 = vadd.f32 %v1009, %v1025
          %v1034 = vadd.f32 %v1010, %v1026
          %v1035 = vadd.f32 %v1011, %v1027
          %1036 = vst.msk [vmem:[%s328] sm:$0xff] %vm910, %v1028
          %1037 = vst.msk [vmem:[%s328 + $0x8] sm:$0xff] %vm910, %v1029
          %1038 = vst.msk [vmem:[%s328 + $0x10] sm:$0xff] %vm910, %v1030
          %1039 = vst.msk [vmem:[%s328 + $0x18] sm:$0xff] %vm910, %v1031
          %1040 = vst.msk [vmem:[%s328 + $0x20] sm:$0xff] %vm910, %v1032
          %1041 = vst.msk [vmem:[%s328 + $0x28] sm:$0xff] %vm910, %v1033
          %1042 = vst.msk [vmem:[%s328 + $0x30] sm:$0xff] %vm910, %v1034
          %1043 = vst.msk [vmem:[%s328 + $0x38] sm:$0xff] %vm910, %v1035
        $region48: #{self_attention3d.3} parent=39 // pred_fallthru
          _
        %s1044 = sand.u32 %s182, 1
        %s1045 = scalar_lea.sflag [#allocation7], %s1044
        %s1046 = sand.u32 %s182, 1
        %s1047 = smul.addr %s1046, 64
        %s1048 = scalar_lea.vmem [#allocation6], %s1047
        // Predicated region
        $region49: #{self_attention3d.3} parent=39 // pred_check
          %p1049 = pneg %p192
        $region50: #{self_attention3d.3} parent=39 // pred_check_branch
          %1051 = sbr.rel (%p1049) target = $region52
        $region51: #{self_attention3d.3} parent=39 // pred_region
          %s1052 = smul.u32 8, %s26
          %s1054 = ssub.s32 1024, 1024
          %1055 = vsyncadd %s1045, %s1054
          %s1056 = smul.addr %s25, 8
          %s1057 = sadd.s32 %s1052, %s1056
          %s1058 = smul.addr %s1057, 128
          %s1059 = scalar_lea.hbm %s5, %s1058
          %s1060 = sshll.u32 %s1048, 4
          %s1061 = int_to_ptr.vmem [resolvable:$true] %s1060
          %1066 = dma.vmem_to_hbm [thread:$0]  %s1061, 1024, %s1059, %s1045, 128, 128, 8
        $region52: #{self_attention3d.3} parent=39 // pred_fallthru
          _
      $region40: #{self_attention3d.3} parent=5 // pred_fallthru
        _
      %p1067 = scmp.le.s32.totalorder 2, %s15
      // Predicated region
      $region53: #{self_attention3d.3} parent=5 // pred_check
        %p1068 = pneg %p1067
      $region54: #{self_attention3d.3} parent=5 // pred_check_branch
        %1070 = sbr.rel (%p1068) target = $region56
      $region55: #{self_attention3d.3} parent=5 // pred_region
        %s1071 = ssub.s32 %s15, 2
        // Predicated region
        $region57: #{self_attention3d.3} parent=55 // pred_check
          %p1072 = pneg %p198
        $region58: #{self_attention3d.3} parent=55 // pred_check_branch
          %1074 = sbr.rel (%p1072) target = $region60
        $region59: #{self_attention3d.3} parent=55 // pred_region
          %s1075 = sand.u32 %s183, 1
          %s1076 = scalar_lea.sflag [#allocation7], %s1075
          %s1077 = sand.u32 %s183, 1
          %s1078 = smul.addr %s1077, 64
          %s1079 = scalar_lea.vmem [#allocation6], %s1078
          %1080 = dma.done %s1076, 1024
        $region60: #{self_attention3d.3} parent=55 // pred_fallthru
          _
      $region56: #{self_attention3d.3} parent=5 // pred_fallthru
        _
    $region6: #{self_attention3d.3} parent=1 // loop_footer
      %s19 = sadd.s32 1, %s15
    $region7: #{self_attention3d.3} parent=1 // loop_footer_branch
      %14 = sbr.rel target = $region3
    $region8: #{self_attention3d.3} parent=1 // loop_exit
      _
    %1081 = vsyncpa [#allocation7], 1
    %s1082 = scalar_lea.sflag [#allocation7], 1
    %1083 = vsyncpa %s1082, 1

</llo_original>
